<compile_context>
chip_gen: v6e
topology: v6e:2x2x1
jax: 0.10.0
libtpu: 0.0.40
codegen_flags: <defaults>
</compile_context>

<pallas_src>
import functools

import jax
import jax.numpy as jnp
from jax.experimental import pallas as pl
from jax.experimental.pallas import tpu as pltpu

LEAKY_SLOPE = 0.01   # nn.LeakyReLU default
BN_EPS = 1e-5        # nn.BatchNorm1d default
LAT_PAD = 128        # lane-dense padded latent width
HIDDEN = 512

TILE_B = 256                  # batch tile for the tiled path (fills MXU M dim)
SINGLE_BLOCK_MAX_BPAD = 256   # fused single-block kernel up to this padded batch


def _leaky_relu(x):
    # max(x, a*x) == LeakyReLU(x) for 0 < a < 1 (cmp+mul+select -> mul+max).
    return jnp.maximum(x, LEAKY_SLOPE * x)


def _round_up(n, m):
    return ((n + m - 1) // m) * m


# --------------------------------------------------------------------------
# Small-batch path: one fused kernel, whole (padded) batch resident in VMEM.
# --------------------------------------------------------------------------
def _encoder_single_kernel(b_ref, x_ref, w1_ref, b1_ref, w2_ref, b2_ref,
                           gamma_ref, beta_ref, w3_ref, b3_ref, o_ref):
    # x: [B_pad, D_in] f32 (cast to bf16 on-chip); weights bf16; bias/BN f32.
    x = x_ref[...].astype(jnp.bfloat16)

    # Linear 1 + LeakyReLU (bf16 operands, f32 MXU accumulate)
    h1 = jnp.dot(x, w1_ref[...], preferred_element_type=jnp.float32) + b1_ref[...]
    h1 = _leaky_relu(h1)

    # Linear 2
    h2 = jnp.dot(h1.astype(jnp.bfloat16), w2_ref[...],
                 preferred_element_type=jnp.float32) + b2_ref[...]

    # BatchNorm1d (training mode): two-pass biased batch statistics over the
    # *true* batch rows (b_true read from SMEM); pad rows are masked out.
    b_true = b_ref[0]
    b_pad = h2.shape[0]
    row = jax.lax.broadcasted_iota(jnp.int32, (b_pad, 1), 0)
    valid = row < b_true
    inv_b = 1.0 / b_true.astype(jnp.float32)
    h2m = jnp.where(valid, h2, 0.0)
    mean = jnp.sum(h2m, axis=0, keepdims=True) * inv_b
    cent = jnp.where(valid, h2 - mean, 0.0)
    var = jnp.sum(cent * cent, axis=0, keepdims=True) * inv_b
    h2 = (h2 - mean) * jax.lax.rsqrt(var + BN_EPS) * gamma_ref[...] + beta_ref[...]
    h2 = _leaky_relu(h2)

    # Linear 3 (output padded to 128 lanes for an unmasked lane-dense store)
    o_ref[...] = jnp.dot(h2.astype(jnp.bfloat16), w3_ref[...],
                         preferred_element_type=jnp.float32) + b3_ref[...]


# --------------------------------------------------------------------------
# Large-batch tiled path: two pallas_calls, batch-parallel grid, weights pinned
# VMEM-resident via constant index_maps. BN stats computed in XLA in between.
# --------------------------------------------------------------------------
def _h2_tile_kernel(x_ref, w1_ref, b1_ref, w2_ref, b2_ref, h2_ref):
    x = x_ref[...].astype(jnp.bfloat16)
    h1 = jnp.dot(x, w1_ref[...], preferred_element_type=jnp.float32) + b1_ref[...]
    h1 = _leaky_relu(h1)
    h2_ref[...] = jnp.dot(h1.astype(jnp.bfloat16), w2_ref[...],
                          preferred_element_type=jnp.float32) + b2_ref[...]


def _out_tile_kernel(h2_ref, scale_ref, shift_ref, w3_ref, b3_ref, o_ref):
    h = _leaky_relu(h2_ref[...] * scale_ref[...] + shift_ref[...])
    o_ref[...] = jnp.dot(h.astype(jnp.bfloat16), w3_ref[...],
                         preferred_element_type=jnp.float32) + b3_ref[...]


def _clamp_vmem(nbytes):
    return int(min(max(nbytes, 8 << 20), 40 << 20))


@functools.partial(jax.jit, static_argnames=("latent_dim",))
def encoder_forward(x_nchw, params, latent_dim=15):
    B = x_nchw.shape[0]
    # nn.Flatten (row-major, same as torch.flatten). Kept f32; cast on-chip.
    x_flat = x_nchw.reshape(B, -1)
    d_in = x_flat.shape[1]

    w1, b1, w2, b2, gamma, beta, w3p, b3p = params
    hidden = w1.shape[1]
    lat_pad = w3p.shape[1]
    weight_bytes = (w1.size + w2.size + w3p.size) * 2
    small_bytes = (b1.size + b2.size + gamma.size + beta.size + b3p.size) * 4

    b_pad8 = max(_round_up(B, 8), 8)

    if b_pad8 <= SINGLE_BLOCK_MAX_BPAD:
        # ---------------- fused single-block kernel ----------------
        b_pad = b_pad8
        x_p = jnp.pad(x_flat, ((0, b_pad - B), (0, 0))) if b_pad != B else x_flat

        flops = 2 * b_pad * (d_in * hidden + hidden * hidden + hidden * lat_pad)
        bytes_accessed = (b_pad * d_in * 4 + weight_bytes + small_bytes
                          + b_pad * lat_pad * 4)
        # f32 x + bf16 cast + f32/bf16 h1,h2 + BN temps + f32 out, 2x headroom.
        act_bytes = b_pad * (6 * d_in + 16 * hidden + 4 * lat_pad)
        vmem_limit = _clamp_vmem(2 * (act_bytes + weight_bytes + small_bytes))

        out_pad = pl.pallas_call(
            _encoder_single_kernel,
            out_shape=jax.ShapeDtypeStruct((b_pad, lat_pad), jnp.float32),
            in_specs=[pl.BlockSpec(memory_space=pltpu.MemorySpace.SMEM)]
                     + [pl.BlockSpec(memory_space=pltpu.MemorySpace.VMEM)] * 9,
            out_specs=pl.BlockSpec(memory_space=pltpu.MemorySpace.VMEM),
            compiler_params=pltpu.CompilerParams(vmem_limit_bytes=vmem_limit),
            cost_estimate=pl.CostEstimate(flops=flops, transcendentals=hidden,
                                          bytes_accessed=bytes_accessed),
        )(jnp.array([B], jnp.int32), x_p, w1, b1, w2, b2, gamma, beta, w3p, b3p)

        return out_pad[:B, :latent_dim]

    # ---------------- B-tiled two-pass path (large batch) ----------------
    b_pad = _round_up(B, TILE_B)
    x_p = jnp.pad(x_flat, ((0, b_pad - B), (0, 0))) if b_pad != B else x_flat
    n_tiles = b_pad // TILE_B

    # Per-tile live bytes (x/h2/out double-buffered) + resident weights, 2x margin.
    tile_bytes = TILE_B * (2 * 4 * d_in + 2 * 8 * hidden + 2 * 4 * lat_pad)
    vmem_limit = _clamp_vmem(2 * (tile_bytes + weight_bytes + small_bytes))

    # Pass 1: h2 = Linear2(LeakyReLU(Linear1(x)))   (batch-parallel grid)
    flops1 = 2 * b_pad * (d_in * hidden + hidden * hidden)
    bytes1 = (b_pad * d_in * 4 + (w1.size + w2.size) * 2
              + (b1.size + b2.size) * 4 + b_pad * hidden * 4)
    h2 = pl.pallas_call(
        _h2_tile_kernel,
        out_shape=jax.ShapeDtypeStruct((b_pad, hidden), jnp.float32),
        grid=(n_tiles,),
        in_specs=[
            pl.BlockSpec((TILE_B, d_in), lambda i: (i, 0)),
            pl.BlockSpec((d_in, hidden), lambda i: (0, 0)),   # w1: DMA'd once
            pl.BlockSpec((1, hidden), lambda i: (0, 0)),      # b1
            pl.BlockSpec((hidden, hidden), lambda i: (0, 0)), # w2
            pl.BlockSpec((1, hidden), lambda i: (0, 0)),      # b2
        ],
        out_specs=pl.BlockSpec((TILE_B, hidden), lambda i: (i, 0)),
        compiler_params=pltpu.CompilerParams(
            dimension_semantics=("parallel",), vmem_limit_bytes=vmem_limit),
        cost_estimate=pl.CostEstimate(flops=flops1, transcendentals=0,
                                      bytes_accessed=bytes1),
    )(x_p, w1, b1, w2, b2)

    # Training-mode BatchNorm1d statistics: exact two-pass over true batch rows
    # (tiny [B,512] reduction, done in XLA between the two batch-parallel calls).
    h2v = h2[:B]
    mean = jnp.mean(h2v, axis=0, keepdims=True)
    var = jnp.mean(jnp.square(h2v - mean), axis=0, keepdims=True)
    scale = gamma * jax.lax.rsqrt(var + BN_EPS)
    shift = beta - mean * scale

    # Pass 2: out = Linear3(LeakyReLU(h2 * scale + shift))   (batch-parallel)
    flops2 = 2 * b_pad * hidden * lat_pad
    bytes2 = (b_pad * hidden * 4 + w3p.size * 2
              + (b3p.size + scale.size + shift.size) * 4 + b_pad * lat_pad * 4)
    out_pad = pl.pallas_call(
        _out_tile_kernel,
        out_shape=jax.ShapeDtypeStruct((b_pad, lat_pad), jnp.float32),
        grid=(n_tiles,),
        in_specs=[
            pl.BlockSpec((TILE_B, hidden), lambda i: (i, 0)),
            pl.BlockSpec((1, hidden), lambda i: (0, 0)),       # scale
            pl.BlockSpec((1, hidden), lambda i: (0, 0)),       # shift
            pl.BlockSpec((hidden, lat_pad), lambda i: (0, 0)), # w3p: DMA'd once
            pl.BlockSpec((1, lat_pad), lambda i: (0, 0)),      # b3p
        ],
        out_specs=pl.BlockSpec((TILE_B, lat_pad), lambda i: (i, 0)),
        compiler_params=pltpu.CompilerParams(
            dimension_semantics=("parallel",), vmem_limit_bytes=vmem_limit),
        cost_estimate=pl.CostEstimate(flops=flops2, transcendentals=0,
                                      bytes_accessed=bytes2),
    )(h2, scale, shift, w3p, b3p)

    return out_pad[:B, :latent_dim]


def init_params(key, in_features, hidden=512, latent_dim=15, lat_pad=LAT_PAD):
    """Deterministic init mimicking PyTorch Linear default (U(-1/sqrt(fan_in), ..))."""
    ks = jax.random.split(key, 6)

    def lin(kw, kb, fan_in, fan_out):
        bound = 1.0 / jnp.sqrt(fan_in)
        w = jax.random.uniform(kw, (fan_in, fan_out), jnp.float32, -bound, bound)
        b = jax.random.uniform(kb, (1, fan_out), jnp.float32, -bound, bound)
        return w, b

    w1, b1 = lin(ks[0], ks[1], in_features, hidden)
    w2, b2 = lin(ks[2], ks[3], hidden, hidden)
    gamma = jnp.ones((1, hidden), jnp.float32)   # BatchNorm1d affine weight
    beta = jnp.zeros((1, hidden), jnp.float32)   # BatchNorm1d affine bias
    w3, b3 = lin(ks[4], ks[5], hidden, latent_dim)

    # Pad the last layer to a lane-dense 128-wide output; extra columns are zero.
    w3p = jnp.zeros((hidden, lat_pad), jnp.float32).at[:, :latent_dim].set(w3)
    b3p = jnp.zeros((1, lat_pad), jnp.float32).at[:, :latent_dim].set(b3)

    # Weight matrices in bf16 (halves weight HBM traffic; MXU is bf16-native).
    # Biases / BN affine stay f32.
    return (w1.astype(jnp.bfloat16), b1,
            w2.astype(jnp.bfloat16), b2,
            gamma, beta,
            w3p.astype(jnp.bfloat16), b3p)


def reference_forward(x_nchw, params, latent_dim=15):
    """Pure-JAX reference of the PyTorch forward (training-mode BatchNorm),
    mirroring the kernel's bf16 operand / f32 accumulate scheme."""
    w1, b1, w2, b2, gamma, beta, w3p, b3p = params
    f32 = jnp.float32
    hp = jax.lax.Precision.HIGHEST
    x = x_nchw.reshape(x_nchw.shape[0], -1).astype(jnp.bfloat16).astype(f32)
    h = _leaky_relu(jnp.dot(x, w1.astype(f32), precision=hp) + b1)
    h = jnp.dot(h.astype(jnp.bfloat16).astype(f32), w2.astype(f32), precision=hp) + b2
    mean = jnp.mean(h, axis=0, keepdims=True)
    var = jnp.mean((h - mean) ** 2, axis=0, keepdims=True)
    h = (h - mean) * jax.lax.rsqrt(var + BN_EPS) * gamma + beta
    h = _leaky_relu(h)
    out = jnp.dot(h.astype(jnp.bfloat16).astype(f32), w3p.astype(f32), precision=hp) + b3p
    return out[:, :latent_dim]


if __name__ == "__main__":
    B, C, H, W = 2, 4, 16, 16
    LATENT = 15
    IN_FEATURES = C * H * W  # 1024

    key = jax.random.PRNGKey(0)
    k_x, k_p, k_x2 = jax.random.split(key, 3)
    params = init_params(k_p, IN_FEATURES, hidden=HIDDEN, latent_dim=LATENT)

    # Small-batch fused single-block path (B=2 -> padded to 8 rows).
    x = jax.random.normal(k_x, (B, C, H, W), jnp.float32)
    out = jax.block_until_ready(encoder_forward(x, params, latent_dim=LATENT))
    ref = reference_forward(x, params, latent_dim=LATENT)
    assert out.shape == (B, LATENT), out.shape
    assert jnp.allclose(out, ref, atol=1e-2, rtol=1e-2), "small-batch mismatch"

    # Large-batch B-tiled path (500 rows -> 2 parallel tiles of 256).
    B2 = 500
    x2 = jax.random.normal(k_x2, (B2, C, H, W), jnp.float32)
    out2 = jax.block_until_ready(encoder_forward(x2, params, latent_dim=LATENT))
    ref2 = reference_forward(x2, params, latent_dim=LATENT)
    assert out2.shape == (B2, LATENT), out2.shape
    assert jnp.allclose(out2, ref2, atol=1e-2, rtol=1e-2), "tiled-path mismatch"

    print("KERNEL_OK")
</pallas_src>

<mosaic_0001>
module attributes {stable_mosaic.version = 11 : i64} {
  func.func @_encoder_single_kernel(%arg0: memref<1xi32, #tpu.memory_space<smem>>, %arg1: memref<8x1024xf32, #tpu.memory_space<vmem>>, %arg2: memref<1024x512xbf16, #tpu.memory_space<vmem>>, %arg3: memref<1x512xf32, #tpu.memory_space<vmem>>, %arg4: memref<512x512xbf16, #tpu.memory_space<vmem>>, %arg5: memref<1x512xf32, #tpu.memory_space<vmem>>, %arg6: memref<1x512xf32, #tpu.memory_space<vmem>>, %arg7: memref<1x512xf32, #tpu.memory_space<vmem>>, %arg8: memref<512x128xbf16, #tpu.memory_space<vmem>>, %arg9: memref<1x128xf32, #tpu.memory_space<vmem>>, %arg10: memref<8x128xf32, #tpu.memory_space<vmem>>) attributes {dimension_semantics = [], scalar_prefetch = 0 : i64, scratch_operands = 0 : i64, tpu.core_type = #tpu.core_type<tc>} {
    %c0 = arith.constant 0 : index
    %c0_0 = arith.constant 0 : index
    %0 = vector.load %arg1[%c0, %c0_0] : memref<8x1024xf32, #tpu.memory_space<vmem>>, vector<8x1024xf32>
    %1 = arith.truncf %0 : vector<8x1024xf32> to vector<8x1024xbf16>
    %c0_1 = arith.constant 0 : index
    %c0_2 = arith.constant 0 : index
    %2 = vector.load %arg2[%c0_1, %c0_2] : memref<1024x512xbf16, #tpu.memory_space<vmem>>, vector<1024x512xbf16>
    %cst = arith.constant dense<0.000000e+00> : vector<8x512xf32>
    %3 = tpu.matmul %1, %2, %cst {dimension_numbers = #tpu.dot_dimension_numbers<[1], [0], [0], [1], [0, 0, 1, 1], [], []>} : vector<8x1024xbf16>, vector<1024x512xbf16>, vector<8x512xf32> -> vector<8x512xf32>
    %c0_3 = arith.constant 0 : index
    %c0_4 = arith.constant 0 : index
    %4 = vector.load %arg3[%c0_3, %c0_4] : memref<1x512xf32, #tpu.memory_space<vmem>>, vector<1x512xf32>
    %5 = vector.broadcast %4 : vector<1x512xf32> to vector<8x512xf32>
    %6 = arith.addf %3, %5 : vector<8x512xf32>
    %cst_5 = arith.constant 0.00999999977 : f32
    %7 = vector.broadcast %cst_5 : f32 to vector<8x512xf32>
    %8 = arith.mulf %7, %6 : vector<8x512xf32>
    %9 = arith.maximumf %6, %8 : vector<8x512xf32>
    %10 = arith.truncf %9 : vector<8x512xf32> to vector<8x512xbf16>
    %c0_6 = arith.constant 0 : index
    %c0_7 = arith.constant 0 : index
    %11 = vector.load %arg4[%c0_6, %c0_7] : memref<512x512xbf16, #tpu.memory_space<vmem>>, vector<512x512xbf16>
    %cst_8 = arith.constant dense<0.000000e+00> : vector<8x512xf32>
    %12 = tpu.matmul %10, %11, %cst_8 {dimension_numbers = #tpu.dot_dimension_numbers<[1], [0], [0], [1], [0, 0, 1, 1], [], []>} : vector<8x512xbf16>, vector<512x512xbf16>, vector<8x512xf32> -> vector<8x512xf32>
    %c0_9 = arith.constant 0 : index
    %c0_10 = arith.constant 0 : index
    %13 = vector.load %arg5[%c0_9, %c0_10] : memref<1x512xf32, #tpu.memory_space<vmem>>, vector<1x512xf32>
    %14 = vector.broadcast %13 : vector<1x512xf32> to vector<8x512xf32>
    %15 = arith.addf %12, %14 : vector<8x512xf32>
    %c0_11 = arith.constant 0 : index
    %16 = memref.load %arg0[%c0_11] : memref<1xi32, #tpu.memory_space<smem>>
    %17 = tpu.iota {dimensions = array<i32: 0>} : vector<8x1xi32>
    %18 = vector.broadcast %16 : i32 to vector<8x1xi32>
    %19 = arith.cmpi slt, %17, %18 : vector<8x1xi32>
    %20 = arith.sitofp %16 : i32 to f32
    %cst_12 = arith.constant 1.000000e+00 : f32
    %21 = arith.divf %cst_12, %20 : f32
    %cst_13 = arith.constant 0.000000e+00 : f32
    %22 = vector.shape_cast %19 : vector<8x1xi1> to vector<8x1xi1>
    %23 = vector.broadcast %22 : vector<8x1xi1> to vector<8x512xi1>
    %24 = vector.broadcast %cst_13 : f32 to vector<8x512xf32>
    %25 = arith.select %23, %15, %24 : vector<8x512xi1>, vector<8x512xf32>
    %cst_14 = arith.constant dense<0.000000e+00> : vector<512xf32>
    %26 = vector.multi_reduction <add>, %25, %cst_14 [0] : vector<8x512xf32> to vector<512xf32>
    %27 = vector.shape_cast %26 : vector<512xf32> to vector<1x512xf32>
    %28 = vector.broadcast %21 : f32 to vector<1x512xf32>
    %29 = arith.mulf %27, %28 : vector<1x512xf32>
    %30 = vector.broadcast %29 : vector<1x512xf32> to vector<8x512xf32>
    %31 = arith.subf %15, %30 : vector<8x512xf32>
    %cst_15 = arith.constant 0.000000e+00 : f32
    %32 = vector.shape_cast %19 : vector<8x1xi1> to vector<8x1xi1>
    %33 = vector.broadcast %32 : vector<8x1xi1> to vector<8x512xi1>
    %34 = vector.broadcast %cst_15 : f32 to vector<8x512xf32>
    %35 = arith.select %33, %31, %34 : vector<8x512xi1>, vector<8x512xf32>
    %36 = arith.mulf %35, %35 : vector<8x512xf32>
    %cst_16 = arith.constant dense<0.000000e+00> : vector<512xf32>
    %37 = vector.multi_reduction <add>, %36, %cst_16 [0] : vector<8x512xf32> to vector<512xf32>
    %38 = vector.shape_cast %37 : vector<512xf32> to vector<1x512xf32>
    %39 = vector.broadcast %21 : f32 to vector<1x512xf32>
    %40 = arith.mulf %38, %39 : vector<1x512xf32>
    %41 = vector.broadcast %29 : vector<1x512xf32> to vector<8x512xf32>
    %42 = arith.subf %15, %41 : vector<8x512xf32>
    %cst_17 = arith.constant 9.99999974E-6 : f32
    %43 = vector.broadcast %cst_17 : f32 to vector<1x512xf32>
    %44 = arith.addf %40, %43 : vector<1x512xf32>
    %45 = math.rsqrt %44 : vector<1x512xf32>
    %46 = vector.broadcast %45 : vector<1x512xf32> to vector<8x512xf32>
    %47 = arith.mulf %42, %46 : vector<8x512xf32>
    %c0_18 = arith.constant 0 : index
    %c0_19 = arith.constant 0 : index
    %48 = vector.load %arg6[%c0_18, %c0_19] : memref<1x512xf32, #tpu.memory_space<vmem>>, vector<1x512xf32>
    %49 = vector.broadcast %48 : vector<1x512xf32> to vector<8x512xf32>
    %50 = arith.mulf %47, %49 : vector<8x512xf32>
    %c0_20 = arith.constant 0 : index
    %c0_21 = arith.constant 0 : index
    %51 = vector.load %arg7[%c0_20, %c0_21] : memref<1x512xf32, #tpu.memory_space<vmem>>, vector<1x512xf32>
    %52 = vector.broadcast %51 : vector<1x512xf32> to vector<8x512xf32>
    %53 = arith.addf %50, %52 : vector<8x512xf32>
    %cst_22 = arith.constant 0.00999999977 : f32
    %54 = vector.broadcast %cst_22 : f32 to vector<8x512xf32>
    %55 = arith.mulf %54, %53 : vector<8x512xf32>
    %56 = arith.maximumf %53, %55 : vector<8x512xf32>
    %57 = arith.truncf %56 : vector<8x512xf32> to vector<8x512xbf16>
    %c0_23 = arith.constant 0 : index
    %c0_24 = arith.constant 0 : index
    %58 = vector.load %arg8[%c0_23, %c0_24] : memref<512x128xbf16, #tpu.memory_space<vmem>>, vector<512x128xbf16>
    %cst_25 = arith.constant dense<0.000000e+00> : vector<8x128xf32>
    %59 = tpu.matmul %57, %58, %cst_25 {dimension_numbers = #tpu.dot_dimension_numbers<[1], [0], [0], [1], [0, 0, 1, 1], [], []>} : vector<8x512xbf16>, vector<512x128xbf16>, vector<8x128xf32> -> vector<8x128xf32>
    %c0_26 = arith.constant 0 : index
    %c0_27 = arith.constant 0 : index
    %60 = vector.load %arg9[%c0_26, %c0_27] : memref<1x128xf32, #tpu.memory_space<vmem>>, vector<1x128xf32>
    %61 = vector.broadcast %60 : vector<1x128xf32> to vector<8x128xf32>
    %62 = arith.addf %59, %61 : vector<8x128xf32>
    %c0_28 = arith.constant 0 : index
    %c0_29 = arith.constant 0 : index
    %63 = vector.load %arg10[%c0_28, %c0_29] : memref<8x128xf32, #tpu.memory_space<vmem>>, vector<8x128xf32>
    tpu.vector_store %arg10[%c0_28, %c0_29], %62 {strides = array<i32>} : memref<8x128xf32, #tpu.memory_space<vmem>>, vector<8x128xf32>,
    return
  }
}

</mosaic_0001>

<llo_original>
// kernel: encoder_forward.1
$region0: #{encoder_forward.1}
  #allocation0 [shape = 'u32[]', space=smem, size = 0x4, offset = 0x4, fixed_abs, tag = 'smem constant byte address 0x4 - core index']
  #allocation1 [shape = 'u32[144,128]{1,0:T(1,128)}', space=vmem, size = 0x12000, scoped, tag = 'internal scratch']
  #allocation2 [shape = 's32[1]{0:T(128)S(6)}', space=smem, size = 0x200, scoped, tag = 'scoped memory for encoder_forward.1']
  %s0 = inlined_call_operand.<no memory space> [shape: s32[1], index: 0, kind: input, shape index: {}]
  %s1 = inlined_call_operand.vmem [shape: f32[8,1024], index: 1, kind: input, shape index: {}]
  %s2 = inlined_call_operand.hbm [shape: bf16[1024,512], index: 2, kind: input, shape index: {}]
  %s3 = inlined_call_operand.vmem [shape: f32[1,512], index: 3, kind: input, shape index: {}]
  %s4 = inlined_call_operand.hbm [shape: bf16[512,512], index: 4, kind: input, shape index: {}]
  %s5 = inlined_call_operand.vmem [shape: f32[1,512], index: 5, kind: input, shape index: {}]
  %s6 = inlined_call_operand.vmem [shape: f32[1,512], index: 6, kind: input, shape index: {}]
  %s7 = inlined_call_operand.vmem [shape: f32[1,512], index: 7, kind: input, shape index: {}]
  %s8 = inlined_call_operand.hbm [shape: bf16[512,128], index: 8, kind: input, shape index: {}]
  %s9 = inlined_call_operand.vmem [shape: f32[1,128], index: 9, kind: input, shape index: {}]
  %s10 = inlined_call_operand.vmem [shape: f32[8,128], index: 10, kind: output, shape index: {}]
  %s11 = sld [smem:[#allocation0]]
  $region62: #{encoder_forward.1} parent=0
    _
  %s13 = ssub.s32 1, %s11
  %s14 = scalar_select 0, %s13, %s11
  %15 = sst [smem:[#allocation2]] %s0
  $region1: #{encoder_forward.1} parent=0
    #allocation3 [shape = 'u8[1048576]{0}', space=vmem, size = 0x100000, scoped, tag = 'input window, operand 2, single buffered']
    #allocation4 [shape = 's32[1]{0}', space=sflag, size = 0x4, scoped, tag = 'scoped memory for encoder_forward.1']
    #allocation5 [shape = 'u8[524288]{0}', space=vmem, size = 0x80000, scoped, tag = 'input window, operand 4, single buffered']
    #allocation6 [shape = 's32[1]{0}', space=sflag, size = 0x4, scoped, tag = 'scoped memory for encoder_forward.1']
    #allocation7 [shape = 'u8[131072]{0}', space=vmem, size = 0x20000, scoped, tag = 'input window, operand 8, single buffered']
    %16 = vsyncpa [#allocation4], 0
    %17 = vsyncpa [#allocation6], 0
    // Predicated region
    $region2: #{encoder_forward.1} parent=1 // pred_check
      _
    $region3: #{encoder_forward.1} parent=1 // pred_check_branch
      %19 = sbr.rel (0) target = $region5
    $region4: #{encoder_forward.1} parent=1 // pred_region
      _
    $region5: #{encoder_forward.1} parent=1 // pred_fallthru
      _
    // Predicated region
    $region6: #{encoder_forward.1} parent=1 // pred_check
      _
    $region7: #{encoder_forward.1} parent=1 // pred_check_branch
      %21 = sbr.rel (0) target = $region9
    $region8: #{encoder_forward.1} parent=1 // pred_region
      _
    $region9: #{encoder_forward.1} parent=1 // pred_fallthru
      _
    // Predicated region
    $region10: #{encoder_forward.1} parent=1 // pred_check
      _
    $region11: #{encoder_forward.1} parent=1 // pred_check_branch
      %23 = sbr.rel (0) target = $region13
    $region12: #{encoder_forward.1} parent=1 // pred_region
      %s25 = ssub.s32 32768, 32768
      %26 = vsyncadd [#allocation4], %s25
      %s27 = sshll.u32 [#allocation3], 4
      %s28 = int_to_ptr.vmem [resolvable:$true] %s27
      %33 = dma.hbm_to_vmem [thread:$0]  %s2, 32768, %s28, [#allocation4], 256, 256, 16
    $region13: #{encoder_forward.1} parent=1 // pred_fallthru
      _
    // Predicated region
    $region14: #{encoder_forward.1} parent=1 // pred_check
      _
    $region15: #{encoder_forward.1} parent=1 // pred_check_branch
      %35 = sbr.rel (0) target = $region17
    $region16: #{encoder_forward.1} parent=1 // pred_region
      _
    $region17: #{encoder_forward.1} parent=1 // pred_fallthru
      _
    // Predicated region
    $region18: #{encoder_forward.1} parent=1 // pred_check
      _
    $region19: #{encoder_forward.1} parent=1 // pred_check_branch
      %37 = sbr.rel (0) target = $region21
    $region20: #{encoder_forward.1} parent=1 // pred_region
      %s39 = ssub.s32 16384, 16384
      %40 = vsyncadd [#allocation6], %s39
      %s41 = sshll.u32 [#allocation5], 4
      %s42 = int_to_ptr.vmem [resolvable:$true] %s41
      %47 = dma.hbm_to_vmem [thread:$0]  %s4, 16384, %s42, [#allocation6], 256, 256, 16
    $region21: #{encoder_forward.1} parent=1 // pred_fallthru
      _
    // Predicated region
    $region22: #{encoder_forward.1} parent=1 // pred_check
      _
    $region23: #{encoder_forward.1} parent=1 // pred_check_branch
      %49 = sbr.rel (0) target = $region25
    $region24: #{encoder_forward.1} parent=1 // pred_region
      _
    $region25: #{encoder_forward.1} parent=1 // pred_fallthru
      _
    // Predicated region
    $region26: #{encoder_forward.1} parent=1 // pred_check
      _
    $region27: #{encoder_forward.1} parent=1 // pred_check_branch
      %51 = sbr.rel (0) target = $region29
    $region28: #{encoder_forward.1} parent=1 // pred_region
      _
    $region29: #{encoder_forward.1} parent=1 // pred_fallthru
      _
    // Predicated region
    $region30: #{encoder_forward.1} parent=1 // pred_check
      _
    $region31: #{encoder_forward.1} parent=1 // pred_check_branch
      %53 = sbr.rel (0) target = $region33
    $region32: #{encoder_forward.1} parent=1 // pred_region
      _
    $region33: #{encoder_forward.1} parent=1 // pred_fallthru
      _
    // Predicated region
    $region34: #{encoder_forward.1} parent=1 // pred_check
      _
    $region35: #{encoder_forward.1} parent=1 // pred_check_branch
      %55 = sbr.rel (0) target = $region37
    $region36: #{encoder_forward.1} parent=1 // pred_region
      %s57 = ssub.s32 4096, 4096
      %58 = vsyncadd [#allocation6], %s57
      %s59 = sshll.u32 [#allocation7], 4
      %s60 = int_to_ptr.vmem [resolvable:$true] %s59
      %65 = dma.hbm_to_vmem [thread:$0]  %s8, 4096, %s60, [#allocation6], 64, 64, 4
    $region37: #{encoder_forward.1} parent=1 // pred_fallthru
      _
    // Predicated region
    $region38: #{encoder_forward.1} parent=1 // pred_check
      _
    $region39: #{encoder_forward.1} parent=1 // pred_check_branch
      %67 = sbr.rel (0) target = $region41
    $region40: #{encoder_forward.1} parent=1 // pred_region
      _
    $region41: #{encoder_forward.1} parent=1 // pred_fallthru
      _
    // Predicated region
    $region42: #{encoder_forward.1} parent=1 // pred_check
      _
    $region43: #{encoder_forward.1} parent=1 // pred_check_branch
      %69 = sbr.rel (0) target = $region45
    $region44: #{encoder_forward.1} parent=1 // pred_region
      %70 = dma.done [#allocation4], 32768
    $region45: #{encoder_forward.1} parent=1 // pred_fallthru
      _
    // Predicated region
    $region46: #{encoder_forward.1} parent=1 // pred_check
      _
    $region47: #{encoder_forward.1} parent=1 // pred_check_branch
      %72 = sbr.rel (0) target = $region49
    $region48: #{encoder_forward.1} parent=1 // pred_region
      %73 = dma.done [#allocation6], 16384
    $region49: #{encoder_forward.1} parent=1 // pred_fallthru
      _
    // Predicated region
    $region50: #{encoder_forward.1} parent=1 // pred_check
      _
    $region51: #{encoder_forward.1} parent=1 // pred_check_branch
      %75 = sbr.rel (0) target = $region53
    $region52: #{encoder_forward.1} parent=1 // pred_region
      %76 = dma.done [#allocation6], 4096
    $region53: #{encoder_forward.1} parent=1 // pred_fallthru
      _
    %v78 = vld [vmem:[%s1] sm:$0xff]
    %v79 = vld [vmem:[%s1 + $0x8] sm:$0xff]
    %v80 = vld [vmem:[%s1 + $0x10] sm:$0xff]
    %v81 = vld [vmem:[%s1 + $0x18] sm:$0xff]
    %v82 = vld [vmem:[%s1 + $0x20] sm:$0xff]
    %v83 = vld [vmem:[%s1 + $0x28] sm:$0xff]
    %v84 = vld [vmem:[%s1 + $0x30] sm:$0xff]
    %v85 = vld [vmem:[%s1 + $0x38] sm:$0xff]
    %v86 = vpack.c.bf16 %v78, %v78
    %v87 = vpack.c.bf16 %v79, %v79
    %v88 = vpack.c.bf16 %v80, %v80
    %v89 = vpack.c.bf16 %v81, %v81
    %v90 = vpack.c.bf16 %v82, %v82
    %v91 = vpack.c.bf16 %v83, %v83
    %v92 = vpack.c.bf16 %v84, %v84
    %v93 = vpack.c.bf16 %v85, %v85
    %v94 = vld [vmem:[#allocation3] sm:$0xff]
    %v95 = vld [vmem:[#allocation3 + $0x8] sm:$0xff]
    %v96 = vld [vmem:[#allocation3 + $0x10] sm:$0xff]
    %v97 = vld [vmem:[#allocation3 + $0x18] sm:$0xff]
    %v98 = vld [vmem:[#allocation3 + $0x20] sm:$0xff]
    %v99 = vld [vmem:[#allocation3 + $0x28] sm:$0xff]
    %v100 = vld [vmem:[#allocation3 + $0x30] sm:$0xff]
    %v101 = vld [vmem:[#allocation3 + $0x38] sm:$0xff]
    %v102 = vld [vmem:[#allocation3 + $0x40] sm:$0xff]
    %v103 = vld [vmem:[#allocation3 + $0x48] sm:$0xff]
    %v104 = vld [vmem:[#allocation3 + $0x50] sm:$0xff]
    %v105 = vld [vmem:[#allocation3 + $0x58] sm:$0xff]
    %v106 = vld [vmem:[#allocation3 + $0x60] sm:$0xff]
    %v107 = vld [vmem:[#allocation3 + $0x68] sm:$0xff]
    %v108 = vld [vmem:[#allocation3 + $0x70] sm:$0xff]
    %v109 = vld [vmem:[#allocation3 + $0x78] sm:$0xff]
    %v110 = vld [vmem:[#allocation3 + $0x80] sm:$0xff]
    %v111 = vld [vmem:[#allocation3 + $0x88] sm:$0xff]
    %v112 = vld [vmem:[#allocation3 + $0x90] sm:$0xff]
    %v113 = vld [vmem:[#allocation3 + $0x98] sm:$0xff]
    %v114 = vld [vmem:[#allocation3 + $0xa0] sm:$0xff]
    %v115 = vld [vmem:[#allocation3 + $0xa8] sm:$0xff]
    %v116 = vld [vmem:[#allocation3 + $0xb0] sm:$0xff]
    %v117 = vld [vmem:[#allocation3 + $0xb8] sm:$0xff]
    %v118 = vld [vmem:[#allocation3 + $0xc0] sm:$0xff]
    %v119 = vld [vmem:[#allocation3 + $0xc8] sm:$0xff]
    %v120 = vld [vmem:[#allocation3 + $0xd0] sm:$0xff]
    %v121 = vld [vmem:[#allocation3 + $0xd8] sm:$0xff]
    %v122 = vld [vmem:[#allocation3 + $0xe0] sm:$0xff]
    %v123 = vld [vmem:[#allocation3 + $0xe8] sm:$0xff]
    %v124 = vld [vmem:[#allocation3 + $0xf0] sm:$0xff]
    %v125 = vld [vmem:[#allocation3 + $0xf8] sm:$0xff]
    %v126 = vld [vmem:[#allocation3 + $0x100] sm:$0xff]
    %v127 = vld [vmem:[#allocation3 + $0x108] sm:$0xff]
    %v128 = vld [vmem:[#allocation3 + $0x110] sm:$0xff]
    %v129 = vld [vmem:[#allocation3 + $0x118] sm:$0xff]
    %v130 = vld [vmem:[#allocation3 + $0x120] sm:$0xff]
    %v131 = vld [vmem:[#allocation3 + $0x128] sm:$0xff]
    %v132 = vld [vmem:[#allocation3 + $0x130] sm:$0xff]
    %v133 = vld [vmem:[#allocation3 + $0x138] sm:$0xff]
    %v134 = vld [vmem:[#allocation3 + $0x140] sm:$0xff]
    %v135 = vld [vmem:[#allocation3 + $0x148] sm:$0xff]
    %v136 = vld [vmem:[#allocation3 + $0x150] sm:$0xff]
    %v137 = vld [vmem:[#allocation3 + $0x158] sm:$0xff]
    %v138 = vld [vmem:[#allocation3 + $0x160] sm:$0xff]
    %v139 = vld [vmem:[#allocation3 + $0x168] sm:$0xff]
    %v140 = vld [vmem:[#allocation3 + $0x170] sm:$0xff]
    %v141 = vld [vmem:[#allocation3 + $0x178] sm:$0xff]
    %v142 = vld [vmem:[#allocation3 + $0x180] sm:$0xff]
    %v143 = vld [vmem:[#allocation3 + $0x188] sm:$0xff]
    %v144 = vld [vmem:[#allocation3 + $0x190] sm:$0xff]
    %v145 = vld [vmem:[#allocation3 + $0x198] sm:$0xff]
    %v146 = vld [vmem:[#allocation3 + $0x1a0] sm:$0xff]
    %v147 = vld [vmem:[#allocation3 + $0x1a8] sm:$0xff]
    %v148 = vld [vmem:[#allocation3 + $0x1b0] sm:$0xff]
    %v149 = vld [vmem:[#allocation3 + $0x1b8] sm:$0xff]
    %v150 = vld [vmem:[#allocation3 + $0x1c0] sm:$0xff]
    %v151 = vld [vmem:[#allocation3 + $0x1c8] sm:$0xff]
    %v152 = vld [vmem:[#allocation3 + $0x1d0] sm:$0xff]
    %v153 = vld [vmem:[#allocation3 + $0x1d8] sm:$0xff]
    %v154 = vld [vmem:[#allocation3 + $0x1e0] sm:$0xff]
    %v155 = vld [vmem:[#allocation3 + $0x1e8] sm:$0xff]
    %v156 = vld [vmem:[#allocation3 + $0x1f0] sm:$0xff]
    %v157 = vld [vmem:[#allocation3 + $0x1f8] sm:$0xff]
    %v158 = vld [vmem:[#allocation3 + $0x200] sm:$0xff]
    %v159 = vld [vmem:[#allocation3 + $0x208] sm:$0xff]
    %v160 = vld [vmem:[#allocation3 + $0x210] sm:$0xff]
    %v161 = vld [vmem:[#allocation3 + $0x218] sm:$0xff]
    %v162 = vld [vmem:[#allocation3 + $0x220] sm:$0xff]
    %v163 = vld [vmem:[#allocation3 + $0x228] sm:$0xff]
    %v164 = vld [vmem:[#allocation3 + $0x230] sm:$0xff]
    %v165 = vld [vmem:[#allocation3 + $0x238] sm:$0xff]
    %v166 = vld [vmem:[#allocation3 + $0x240] sm:$0xff]
    %v167 = vld [vmem:[#allocation3 + $0x248] sm:$0xff]
    %v168 = vld [vmem:[#allocation3 + $0x250] sm:$0xff]
    %v169 = vld [vmem:[#allocation3 + $0x258] sm:$0xff]
    %v170 = vld [vmem:[#allocation3 + $0x260] sm:$0xff]
    %v171 = vld [vmem:[#allocation3 + $0x268] sm:$0xff]
    %v172 = vld [vmem:[#allocation3 + $0x270] sm:$0xff]
    %v173 = vld [vmem:[#allocation3 + $0x278] sm:$0xff]
    %v174 = vld [vmem:[#allocation3 + $0x280] sm:$0xff]
    %v175 = vld [vmem:[#allocation3 + $0x288] sm:$0xff]
    %v176 = vld [vmem:[#allocation3 + $0x290] sm:$0xff]
    %v177 = vld [vmem:[#allocation3 + $0x298] sm:$0xff]
    %v178 = vld [vmem:[#allocation3 + $0x2a0] sm:$0xff]
    %v179 = vld [vmem:[#allocation3 + $0x2a8] sm:$0xff]
    %v180 = vld [vmem:[#allocation3 + $0x2b0] sm:$0xff]
    %v181 = vld [vmem:[#allocation3 + $0x2b8] sm:$0xff]
    %v182 = vld [vmem:[#allocation3 + $0x2c0] sm:$0xff]
    %v183 = vld [vmem:[#allocation3 + $0x2c8] sm:$0xff]
    %v184 = vld [vmem:[#allocation3 + $0x2d0] sm:$0xff]
    %v185 = vld [vmem:[#allocation3 + $0x2d8] sm:$0xff]
    %v186 = vld [vmem:[#allocation3 + $0x2e0] sm:$0xff]
    %v187 = vld [vmem:[#allocation3 + $0x2e8] sm:$0xff]
    %v188 = vld [vmem:[#allocation3 + $0x2f0] sm:$0xff]
    %v189 = vld [vmem:[#allocation3 + $0x2f8] sm:$0xff]
    %v190 = vld [vmem:[#allocation3 + $0x300] sm:$0xff]
    %v191 = vld [vmem:[#allocation3 + $0x308] sm:$0xff]
    %v192 = vld [vmem:[#allocation3 + $0x310] sm:$0xff]
    %v193 = vld [vmem:[#allocation3 + $0x318] sm:$0xff]
    %v194 = vld [vmem:[#allocation3 + $0x320] sm:$0xff]
    %v195 = vld [vmem:[#allocation3 + $0x328] sm:$0xff]
    %v196 = vld [vmem:[#allocation3 + $0x330] sm:$0xff]
    %v197 = vld [vmem:[#allocation3 + $0x338] sm:$0xff]
    %v198 = vld [vmem:[#allocation3 + $0x340] sm:$0xff]
    %v199 = vld [vmem:[#allocation3 + $0x348] sm:$0xff]
    %v200 = vld [vmem:[#allocation3 + $0x350] sm:$0xff]
    %v201 = vld [vmem:[#allocation3 + $0x358] sm:$0xff]
    %v202 = vld [vmem:[#allocation3 + $0x360] sm:$0xff]
    %v203 = vld [vmem:[#allocation3 + $0x368] sm:$0xff]
    %v204 = vld [vmem:[#allocation3 + $0x370] sm:$0xff]
    %v205 = vld [vmem:[#allocation3 + $0x378] sm:$0xff]
    %v206 = vld [vmem:[#allocation3 + $0x380] sm:$0xff]
    %v207 = vld [vmem:[#allocation3 + $0x388] sm:$0xff]
    %v208 = vld [vmem:[#allocation3 + $0x390] sm:$0xff]
    %v209 = vld [vmem:[#allocation3 + $0x398] sm:$0xff]
    %v210 = vld [vmem:[#allocation3 + $0x3a0] sm:$0xff]
    %v211 = vld [vmem:[#allocation3 + $0x3a8] sm:$0xff]
    %v212 = vld [vmem:[#allocation3 + $0x3b0] sm:$0xff]
    %v213 = vld [vmem:[#allocation3 + $0x3b8] sm:$0xff]
    %v214 = vld [vmem:[#allocation3 + $0x3c0] sm:$0xff]
    %v215 = vld [vmem:[#allocation3 + $0x3c8] sm:$0xff]
    %v216 = vld [vmem:[#allocation3 + $0x3d0] sm:$0xff]
    %v217 = vld [vmem:[#allocation3 + $0x3d8] sm:$0xff]
    %v218 = vld [vmem:[#allocation3 + $0x3e0] sm:$0xff]
    %v219 = vld [vmem:[#allocation3 + $0x3e8] sm:$0xff]
    %v220 = vld [vmem:[#allocation3 + $0x3f0] sm:$0xff]
    %v221 = vld [vmem:[#allocation3 + $0x3f8] sm:$0xff]
    %v222 = vld [vmem:[#allocation3 + $0x400] sm:$0xff]
    %v223 = vld [vmem:[#allocation3 + $0x408] sm:$0xff]
    %v224 = vld [vmem:[#allocation3 + $0x410] sm:$0xff]
    %v225 = vld [vmem:[#allocation3 + $0x418] sm:$0xff]
    %v226 = vld [vmem:[#allocation3 + $0x420] sm:$0xff]
    %v227 = vld [vmem:[#allocation3 + $0x428] sm:$0xff]
    %v228 = vld [vmem:[#allocation3 + $0x430] sm:$0xff]
    %v229 = vld [vmem:[#allocation3 + $0x438] sm:$0xff]
    %v230 = vld [vmem:[#allocation3 + $0x440] sm:$0xff]
    %v231 = vld [vmem:[#allocation3 + $0x448] sm:$0xff]
    %v232 = vld [vmem:[#allocation3 + $0x450] sm:$0xff]
    %v233 = vld [vmem:[#allocation3 + $0x458] sm:$0xff]
    %v234 = vld [vmem:[#allocation3 + $0x460] sm:$0xff]
    %v235 = vld [vmem:[#allocation3 + $0x468] sm:$0xff]
    %v236 = vld [vmem:[#allocation3 + $0x470] sm:$0xff]
    %v237 = vld [vmem:[#allocation3 + $0x478] sm:$0xff]
    %v238 = vld [vmem:[#allocation3 + $0x480] sm:$0xff]
    %v239 = vld [vmem:[#allocation3 + $0x488] sm:$0xff]
    %v240 = vld [vmem:[#allocation3 + $0x490] sm:$0xff]
    %v241 = vld [vmem:[#allocation3 + $0x498] sm:$0xff]
    %v242 = vld [vmem:[#allocation3 + $0x4a0] sm:$0xff]
    %v243 = vld [vmem:[#allocation3 + $0x4a8] sm:$0xff]
    %v244 = vld [vmem:[#allocation3 + $0x4b0] sm:$0xff]
    %v245 = vld [vmem:[#allocation3 + $0x4b8] sm:$0xff]
    %v246 = vld [vmem:[#allocation3 + $0x4c0] sm:$0xff]
    %v247 = vld [vmem:[#allocation3 + $0x4c8] sm:$0xff]
    %v248 = vld [vmem:[#allocation3 + $0x4d0] sm:$0xff]
    %v249 = vld [vmem:[#allocation3 + $0x4d8] sm:$0xff]
    %v250 = vld [vmem:[#allocation3 + $0x4e0] sm:$0xff]
    %v251 = vld [vmem:[#allocation3 + $0x4e8] sm:$0xff]
    %v252 = vld [vmem:[#allocation3 + $0x4f0] sm:$0xff]
    %v253 = vld [vmem:[#allocation3 + $0x4f8] sm:$0xff]
    %v254 = vld [vmem:[#allocation3 + $0x500] sm:$0xff]
    %v255 = vld [vmem:[#allocation3 + $0x508] sm:$0xff]
    %v256 = vld [vmem:[#allocation3 + $0x510] sm:$0xff]
    %v257 = vld [vmem:[#allocation3 + $0x518] sm:$0xff]
    %v258 = vld [vmem:[#allocation3 + $0x520] sm:$0xff]
    %v259 = vld [vmem:[#allocation3 + $0x528] sm:$0xff]
    %v260 = vld [vmem:[#allocation3 + $0x530] sm:$0xff]
    %v261 = vld [vmem:[#allocation3 + $0x538] sm:$0xff]
    %v262 = vld [vmem:[#allocation3 + $0x540] sm:$0xff]
    %v263 = vld [vmem:[#allocation3 + $0x548] sm:$0xff]
    %v264 = vld [vmem:[#allocation3 + $0x550] sm:$0xff]
    %v265 = vld [vmem:[#allocation3 + $0x558] sm:$0xff]
    %v266 = vld [vmem:[#allocation3 + $0x560] sm:$0xff]
    %v267 = vld [vmem:[#allocation3 + $0x568] sm:$0xff]
    %v268 = vld [vmem:[#allocation3 + $0x570] sm:$0xff]
    %v269 = vld [vmem:[#allocation3 + $0x578] sm:$0xff]
    %v270 = vld [vmem:[#allocation3 + $0x580] sm:$0xff]
    %v271 = vld [vmem:[#allocation3 + $0x588] sm:$0xff]
    %v272 = vld [vmem:[#allocation3 + $0x590] sm:$0xff]
    %v273 = vld [vmem:[#allocation3 + $0x598] sm:$0xff]
    %v274 = vld [vmem:[#allocation3 + $0x5a0] sm:$0xff]
    %v275 = vld [vmem:[#allocation3 + $0x5a8] sm:$0xff]
    %v276 = vld [vmem:[#allocation3 + $0x5b0] sm:$0xff]
    %v277 = vld [vmem:[#allocation3 + $0x5b8] sm:$0xff]
    %v278 = vld [vmem:[#allocation3 + $0x5c0] sm:$0xff]
    %v279 = vld [vmem:[#allocation3 + $0x5c8] sm:$0xff]
    %v280 = vld [vmem:[#allocation3 + $0x5d0] sm:$0xff]
    %v281 = vld [vmem:[#allocation3 + $0x5d8] sm:$0xff]
    %v282 = vld [vmem:[#allocation3 + $0x5e0] sm:$0xff]
    %v283 = vld [vmem:[#allocation3 + $0x5e8] sm:$0xff]
    %v284 = vld [vmem:[#allocation3 + $0x5f0] sm:$0xff]
    %v285 = vld [vmem:[#allocation3 + $0x5f8] sm:$0xff]
    %v286 = vld [vmem:[#allocation3 + $0x600] sm:$0xff]
    %v287 = vld [vmem:[#allocation3 + $0x608] sm:$0xff]
    %v288 = vld [vmem:[#allocation3 + $0x610] sm:$0xff]
    %v289 = vld [vmem:[#allocation3 + $0x618] sm:$0xff]
    %v290 = vld [vmem:[#allocation3 + $0x620] sm:$0xff]
    %v291 = vld [vmem:[#allocation3 + $0x628] sm:$0xff]
    %v292 = vld [vmem:[#allocation3 + $0x630] sm:$0xff]
    %v293 = vld [vmem:[#allocation3 + $0x638] sm:$0xff]
    %v294 = vld [vmem:[#allocation3 + $0x640] sm:$0xff]
    %v295 = vld [vmem:[#allocation3 + $0x648] sm:$0xff]
    %v296 = vld [vmem:[#allocation3 + $0x650] sm:$0xff]
    %v297 = vld [vmem:[#allocation3 + $0x658] sm:$0xff]
    %v298 = vld [vmem:[#allocation3 + $0x660] sm:$0xff]
    %v299 = vld [vmem:[#allocation3 + $0x668] sm:$0xff]
    %v300 = vld [vmem:[#allocation3 + $0x670] sm:$0xff]
    %v301 = vld [vmem:[#allocation3 + $0x678] sm:$0xff]
    %v302 = vld [vmem:[#allocation3 + $0x680] sm:$0xff]
    %v303 = vld [vmem:[#allocation3 + $0x688] sm:$0xff]
    %v304 = vld [vmem:[#allocation3 + $0x690] sm:$0xff]
    %v305 = vld [vmem:[#allocation3 + $0x698] sm:$0xff]
    %v306 = vld [vmem:[#allocation3 + $0x6a0] sm:$0xff]
    %v307 = vld [vmem:[#allocation3 + $0x6a8] sm:$0xff]
    %v308 = vld [vmem:[#allocation3 + $0x6b0] sm:$0xff]
    %v309 = vld [vmem:[#allocation3 + $0x6b8] sm:$0xff]
    %v310 = vld [vmem:[#allocation3 + $0x6c0] sm:$0xff]
    %v311 = vld [vmem:[#allocation3 + $0x6c8] sm:$0xff]
    %v312 = vld [vmem:[#allocation3 + $0x6d0] sm:$0xff]
    %v313 = vld [vmem:[#allocation3 + $0x6d8] sm:$0xff]
    %v314 = vld [vmem:[#allocation3 + $0x6e0] sm:$0xff]
    %v315 = vld [vmem:[#allocation3 + $0x6e8] sm:$0xff]
    %v316 = vld [vmem:[#allocation3 + $0x6f0] sm:$0xff]
    %v317 = vld [vmem:[#allocation3 + $0x6f8] sm:$0xff]
    %v318 = vld [vmem:[#allocation3 + $0x700] sm:$0xff]
    %v319 = vld [vmem:[#allocation3 + $0x708] sm:$0xff]
    %v320 = vld [vmem:[#allocation3 + $0x710] sm:$0xff]
    %v321 = vld [vmem:[#allocation3 + $0x718] sm:$0xff]
    %v322 = vld [vmem:[#allocation3 + $0x720] sm:$0xff]
    %v323 = vld [vmem:[#allocation3 + $0x728] sm:$0xff]
    %v324 = vld [vmem:[#allocation3 + $0x730] sm:$0xff]
    %v325 = vld [vmem:[#allocation3 + $0x738] sm:$0xff]
    %v326 = vld [vmem:[#allocation3 + $0x740] sm:$0xff]
    %v327 = vld [vmem:[#allocation3 + $0x748] sm:$0xff]
    %v328 = vld [vmem:[#allocation3 + $0x750] sm:$0xff]
    %v329 = vld [vmem:[#allocation3 + $0x758] sm:$0xff]
    %v330 = vld [vmem:[#allocation3 + $0x760] sm:$0xff]
    %v331 = vld [vmem:[#allocation3 + $0x768] sm:$0xff]
    %v332 = vld [vmem:[#allocation3 + $0x770] sm:$0xff]
    %v333 = vld [vmem:[#allocation3 + $0x778] sm:$0xff]
    %v334 = vld [vmem:[#allocation3 + $0x780] sm:$0xff]
    %v335 = vld [vmem:[#allocation3 + $0x788] sm:$0xff]
    %v336 = vld [vmem:[#allocation3 + $0x790] sm:$0xff]
    %v337 = vld [vmem:[#allocation3 + $0x798] sm:$0xff]
    %v338 = vld [vmem:[#allocation3 + $0x7a0] sm:$0xff]
    %v339 = vld [vmem:[#allocation3 + $0x7a8] sm:$0xff]
    %v340 = vld [vmem:[#allocation3 + $0x7b0] sm:$0xff]
    %v341 = vld [vmem:[#allocation3 + $0x7b8] sm:$0xff]
    %v342 = vld [vmem:[#allocation3 + $0x7c0] sm:$0xff]
    %v343 = vld [vmem:[#allocation3 + $0x7c8] sm:$0xff]
    %v344 = vld [vmem:[#allocation3 + $0x7d0] sm:$0xff]
    %v345 = vld [vmem:[#allocation3 + $0x7d8] sm:$0xff]
    %v346 = vld [vmem:[#allocation3 + $0x7e0] sm:$0xff]
    %v347 = vld [vmem:[#allocation3 + $0x7e8] sm:$0xff]
    %v348 = vld [vmem:[#allocation3 + $0x7f0] sm:$0xff]
    %v349 = vld [vmem:[#allocation3 + $0x7f8] sm:$0xff]
    %v350 = vld [vmem:[%s3] sm:$0xf]
    %v352 = vlaneseq
    %v353 = vshrl.u32 %v352, 7
    %v354 = vsub.s32 0, %v353
    %v355 = vrot.slane %v350, %v354
    %v356 = vlaneseq
    %v357 = vshrl.u32 %v356, 7
    %v358 = vsub.s32 1, %v357
    %v359 = vrot.slane %v350, %v358
    %v360 = vlaneseq
    %v361 = vshrl.u32 %v360, 7
    %v362 = vsub.s32 2, %v361
    %v363 = vrot.slane %v350, %v362
    %v364 = vlaneseq
    %v365 = vshrl.u32 %v364, 7
    %v366 = vsub.s32 3, %v365
    %v367 = vrot.slane %v350, %v366
    %v628 = vunpack.c.l.b16 %v94
    %v629 = vunpack.c.h.b16 %v94
    %v630 = vunpack.c.l.b16 %v95
    %v631 = vunpack.c.h.b16 %v95
    %v632 = vunpack.c.l.b16 %v96
    %v633 = vunpack.c.h.b16 %v96
    %v634 = vunpack.c.l.b16 %v97
    %v635 = vunpack.c.h.b16 %v97
    %v636 = vunpack.c.l.b16 %v98
    %v637 = vunpack.c.h.b16 %v98
    %v638 = vunpack.c.l.b16 %v99
    %v639 = vunpack.c.h.b16 %v99
    %v640 = vunpack.c.l.b16 %v100
    %v641 = vunpack.c.h.b16 %v100
    %v642 = vunpack.c.l.b16 %v101
    %v643 = vunpack.c.h.b16 %v101
    %v644 = vunpack.c.l.b16 %v102
    %v645 = vunpack.c.h.b16 %v102
    %v646 = vunpack.c.l.b16 %v103
    %v647 = vunpack.c.h.b16 %v103
    %v648 = vunpack.c.l.b16 %v104
    %v649 = vunpack.c.h.b16 %v104
    %v650 = vunpack.c.l.b16 %v105
    %v651 = vunpack.c.h.b16 %v105
    %v652 = vunpack.c.l.b16 %v106
    %v653 = vunpack.c.h.b16 %v106
    %v654 = vunpack.c.l.b16 %v107
    %v655 = vunpack.c.h.b16 %v107
    %v656 = vunpack.c.l.b16 %v108
    %v657 = vunpack.c.h.b16 %v108
    %v658 = vunpack.c.l.b16 %v109
    %v659 = vunpack.c.h.b16 %v109
    %v660 = vunpack.c.l.b16 %v110
    %v661 = vunpack.c.h.b16 %v110
    %v662 = vunpack.c.l.b16 %v111
    %v663 = vunpack.c.h.b16 %v111
    %v664 = vunpack.c.l.b16 %v112
    %v665 = vunpack.c.h.b16 %v112
    %v666 = vunpack.c.l.b16 %v113
    %v667 = vunpack.c.h.b16 %v113
    %v668 = vunpack.c.l.b16 %v114
    %v669 = vunpack.c.h.b16 %v114
    %v670 = vunpack.c.l.b16 %v115
    %v671 = vunpack.c.h.b16 %v115
    %v672 = vunpack.c.l.b16 %v116
    %v673 = vunpack.c.h.b16 %v116
    %v674 = vunpack.c.l.b16 %v117
    %v675 = vunpack.c.h.b16 %v117
    %v676 = vunpack.c.l.b16 %v118
    %v677 = vunpack.c.h.b16 %v118
    %v678 = vunpack.c.l.b16 %v119
    %v679 = vunpack.c.h.b16 %v119
    %v680 = vunpack.c.l.b16 %v120
    %v681 = vunpack.c.h.b16 %v120
    %v682 = vunpack.c.l.b16 %v121
    %v683 = vunpack.c.h.b16 %v121
    %v684 = vunpack.c.l.b16 %v122
    %v685 = vunpack.c.h.b16 %v122
    %v686 = vunpack.c.l.b16 %v123
    %v687 = vunpack.c.h.b16 %v123
    %v688 = vunpack.c.l.b16 %v124
    %v689 = vunpack.c.h.b16 %v124
    %v690 = vunpack.c.l.b16 %v125
    %v691 = vunpack.c.h.b16 %v125
    %v692 = vunpack.c.l.b16 %v126
    %v693 = vunpack.c.h.b16 %v126
    %v694 = vunpack.c.l.b16 %v127
    %v695 = vunpack.c.h.b16 %v127
    %v696 = vunpack.c.l.b16 %v128
    %v697 = vunpack.c.h.b16 %v128
    %v698 = vunpack.c.l.b16 %v129
    %v699 = vunpack.c.h.b16 %v129
    %v700 = vunpack.c.l.b16 %v130
    %v701 = vunpack.c.h.b16 %v130
    %v702 = vunpack.c.l.b16 %v131
    %v703 = vunpack.c.h.b16 %v131
    %v704 = vunpack.c.l.b16 %v132
    %v705 = vunpack.c.h.b16 %v132
    %v706 = vunpack.c.l.b16 %v133
    %v707 = vunpack.c.h.b16 %v133
    %v708 = vunpack.c.l.b16 %v134
    %v709 = vunpack.c.h.b16 %v134
    %v710 = vunpack.c.l.b16 %v135
    %v711 = vunpack.c.h.b16 %v135
    %v712 = vunpack.c.l.b16 %v136
    %v713 = vunpack.c.h.b16 %v136
    %v714 = vunpack.c.l.b16 %v137
    %v715 = vunpack.c.h.b16 %v137
    %v716 = vunpack.c.l.b16 %v138
    %v717 = vunpack.c.h.b16 %v138
    %v718 = vunpack.c.l.b16 %v139
    %v719 = vunpack.c.h.b16 %v139
    %v720 = vunpack.c.l.b16 %v140
    %v721 = vunpack.c.h.b16 %v140
    %v722 = vunpack.c.l.b16 %v141
    %v723 = vunpack.c.h.b16 %v141
    %v724 = vunpack.c.l.b16 %v142
    %v725 = vunpack.c.h.b16 %v142
    %v726 = vunpack.c.l.b16 %v143
    %v727 = vunpack.c.h.b16 %v143
    %v728 = vunpack.c.l.b16 %v144
    %v729 = vunpack.c.h.b16 %v144
    %v730 = vunpack.c.l.b16 %v145
    %v731 = vunpack.c.h.b16 %v145
    %v732 = vunpack.c.l.b16 %v146
    %v733 = vunpack.c.h.b16 %v146
    %v734 = vunpack.c.l.b16 %v147
    %v735 = vunpack.c.h.b16 %v147
    %v736 = vunpack.c.l.b16 %v148
    %v737 = vunpack.c.h.b16 %v148
    %v738 = vunpack.c.l.b16 %v149
    %v739 = vunpack.c.h.b16 %v149
    %v740 = vunpack.c.l.b16 %v150
    %v741 = vunpack.c.h.b16 %v150
    %v742 = vunpack.c.l.b16 %v151
    %v743 = vunpack.c.h.b16 %v151
    %v744 = vunpack.c.l.b16 %v152
    %v745 = vunpack.c.h.b16 %v152
    %v746 = vunpack.c.l.b16 %v153
    %v747 = vunpack.c.h.b16 %v153
    %v748 = vunpack.c.l.b16 %v154
    %v749 = vunpack.c.h.b16 %v154
    %v750 = vunpack.c.l.b16 %v155
    %v751 = vunpack.c.h.b16 %v155
    %v752 = vunpack.c.l.b16 %v156
    %v753 = vunpack.c.h.b16 %v156
    %v754 = vunpack.c.l.b16 %v157
    %v755 = vunpack.c.h.b16 %v157
    %v756 = vunpack.c.l.b16 %v158
    %v757 = vunpack.c.h.b16 %v158
    %v758 = vunpack.c.l.b16 %v159
    %v759 = vunpack.c.h.b16 %v159
    %v760 = vunpack.c.l.b16 %v160
    %v761 = vunpack.c.h.b16 %v160
    %v762 = vunpack.c.l.b16 %v161
    %v763 = vunpack.c.h.b16 %v161
    %v764 = vunpack.c.l.b16 %v162
    %v765 = vunpack.c.h.b16 %v162
    %v766 = vunpack.c.l.b16 %v163
    %v767 = vunpack.c.h.b16 %v163
    %v768 = vunpack.c.l.b16 %v164
    %v769 = vunpack.c.h.b16 %v164
    %v770 = vunpack.c.l.b16 %v165
    %v771 = vunpack.c.h.b16 %v165
    %v772 = vunpack.c.l.b16 %v166
    %v773 = vunpack.c.h.b16 %v166
    %v774 = vunpack.c.l.b16 %v167
    %v775 = vunpack.c.h.b16 %v167
    %v776 = vunpack.c.l.b16 %v168
    %v777 = vunpack.c.h.b16 %v168
    %v778 = vunpack.c.l.b16 %v169
    %v779 = vunpack.c.h.b16 %v169
    %v780 = vunpack.c.l.b16 %v170
    %v781 = vunpack.c.h.b16 %v170
    %v782 = vunpack.c.l.b16 %v171
    %v783 = vunpack.c.h.b16 %v171
    %v784 = vunpack.c.l.b16 %v172
    %v785 = vunpack.c.h.b16 %v172
    %v786 = vunpack.c.l.b16 %v173
    %v787 = vunpack.c.h.b16 %v173
    %v788 = vunpack.c.l.b16 %v174
    %v789 = vunpack.c.h.b16 %v174
    %v790 = vunpack.c.l.b16 %v175
    %v791 = vunpack.c.h.b16 %v175
    %v792 = vunpack.c.l.b16 %v176
    %v793 = vunpack.c.h.b16 %v176
    %v794 = vunpack.c.l.b16 %v177
    %v795 = vunpack.c.h.b16 %v177
    %v796 = vunpack.c.l.b16 %v178
    %v797 = vunpack.c.h.b16 %v178
    %v798 = vunpack.c.l.b16 %v179
    %v799 = vunpack.c.h.b16 %v179
    %v800 = vunpack.c.l.b16 %v180
    %v801 = vunpack.c.h.b16 %v180
    %v802 = vunpack.c.l.b16 %v181
    %v803 = vunpack.c.h.b16 %v181
    %v804 = vunpack.c.l.b16 %v182
    %v805 = vunpack.c.h.b16 %v182
    %v806 = vunpack.c.l.b16 %v183
    %v807 = vunpack.c.h.b16 %v183
    %v808 = vunpack.c.l.b16 %v184
    %v809 = vunpack.c.h.b16 %v184
    %v810 = vunpack.c.l.b16 %v185
    %v811 = vunpack.c.h.b16 %v185
    %v812 = vunpack.c.l.b16 %v186
    %v813 = vunpack.c.h.b16 %v186
    %v814 = vunpack.c.l.b16 %v187
    %v815 = vunpack.c.h.b16 %v187
    %v816 = vunpack.c.l.b16 %v188
    %v817 = vunpack.c.h.b16 %v188
    %v818 = vunpack.c.l.b16 %v189
    %v819 = vunpack.c.h.b16 %v189
    %v820 = vunpack.c.l.b16 %v190
    %v821 = vunpack.c.h.b16 %v190
    %v822 = vunpack.c.l.b16 %v191
    %v823 = vunpack.c.h.b16 %v191
    %v824 = vunpack.c.l.b16 %v192
    %v825 = vunpack.c.h.b16 %v192
    %v826 = vunpack.c.l.b16 %v193
    %v827 = vunpack.c.h.b16 %v193
    %v828 = vunpack.c.l.b16 %v194
    %v829 = vunpack.c.h.b16 %v194
    %v830 = vunpack.c.l.b16 %v195
    %v831 = vunpack.c.h.b16 %v195
    %v832 = vunpack.c.l.b16 %v196
    %v833 = vunpack.c.h.b16 %v196
    %v834 = vunpack.c.l.b16 %v197
    %v835 = vunpack.c.h.b16 %v197
    %v836 = vunpack.c.l.b16 %v198
    %v837 = vunpack.c.h.b16 %v198
    %v838 = vunpack.c.l.b16 %v199
    %v839 = vunpack.c.h.b16 %v199
    %v840 = vunpack.c.l.b16 %v200
    %v841 = vunpack.c.h.b16 %v200
    %v842 = vunpack.c.l.b16 %v201
    %v843 = vunpack.c.h.b16 %v201
    %v844 = vunpack.c.l.b16 %v202
    %v845 = vunpack.c.h.b16 %v202
    %v846 = vunpack.c.l.b16 %v203
    %v847 = vunpack.c.h.b16 %v203
    %v848 = vunpack.c.l.b16 %v204
    %v849 = vunpack.c.h.b16 %v204
    %v850 = vunpack.c.l.b16 %v205
    %v851 = vunpack.c.h.b16 %v205
    %v852 = vunpack.c.l.b16 %v206
    %v853 = vunpack.c.h.b16 %v206
    %v854 = vunpack.c.l.b16 %v207
    %v855 = vunpack.c.h.b16 %v207
    %v856 = vunpack.c.l.b16 %v208
    %v857 = vunpack.c.h.b16 %v208
    %v858 = vunpack.c.l.b16 %v209
    %v859 = vunpack.c.h.b16 %v209
    %v860 = vunpack.c.l.b16 %v210
    %v861 = vunpack.c.h.b16 %v210
    %v862 = vunpack.c.l.b16 %v211
    %v863 = vunpack.c.h.b16 %v211
    %v864 = vunpack.c.l.b16 %v212
    %v865 = vunpack.c.h.b16 %v212
    %v866 = vunpack.c.l.b16 %v213
    %v867 = vunpack.c.h.b16 %v213
    %v868 = vunpack.c.l.b16 %v214
    %v869 = vunpack.c.h.b16 %v214
    %v870 = vunpack.c.l.b16 %v215
    %v871 = vunpack.c.h.b16 %v215
    %v872 = vunpack.c.l.b16 %v216
    %v873 = vunpack.c.h.b16 %v216
    %v874 = vunpack.c.l.b16 %v217
    %v875 = vunpack.c.h.b16 %v217
    %v876 = vunpack.c.l.b16 %v218
    %v877 = vunpack.c.h.b16 %v218
    %v878 = vunpack.c.l.b16 %v219
    %v879 = vunpack.c.h.b16 %v219
    %v880 = vunpack.c.l.b16 %v220
    %v881 = vunpack.c.h.b16 %v220
    %v882 = vunpack.c.l.b16 %v221
    %v883 = vunpack.c.h.b16 %v221
    %v884 = vunpack.c.l.b16 %v222
    %v885 = vunpack.c.h.b16 %v222
    %v886 = vunpack.c.l.b16 %v223
    %v887 = vunpack.c.h.b16 %v223
    %v888 = vunpack.c.l.b16 %v224
    %v889 = vunpack.c.h.b16 %v224
    %v890 = vunpack.c.l.b16 %v225
    %v891 = vunpack.c.h.b16 %v225
    %v892 = vunpack.c.l.b16 %v226
    %v893 = vunpack.c.h.b16 %v226
    %v894 = vunpack.c.l.b16 %v227
    %v895 = vunpack.c.h.b16 %v227
    %v896 = vunpack.c.l.b16 %v228
    %v897 = vunpack.c.h.b16 %v228
    %v898 = vunpack.c.l.b16 %v229
    %v899 = vunpack.c.h.b16 %v229
    %v900 = vunpack.c.l.b16 %v230
    %v901 = vunpack.c.h.b16 %v230
    %v902 = vunpack.c.l.b16 %v231
    %v903 = vunpack.c.h.b16 %v231
    %v904 = vunpack.c.l.b16 %v232
    %v905 = vunpack.c.h.b16 %v232
    %v906 = vunpack.c.l.b16 %v233
    %v907 = vunpack.c.h.b16 %v233
    %v908 = vunpack.c.l.b16 %v234
    %v909 = vunpack.c.h.b16 %v234
    %v910 = vunpack.c.l.b16 %v235
    %v911 = vunpack.c.h.b16 %v235
    %v912 = vunpack.c.l.b16 %v236
    %v913 = vunpack.c.h.b16 %v236
    %v914 = vunpack.c.l.b16 %v237
    %v915 = vunpack.c.h.b16 %v237
    %v916 = vunpack.c.l.b16 %v238
    %v917 = vunpack.c.h.b16 %v238
    %v918 = vunpack.c.l.b16 %v239
    %v919 = vunpack.c.h.b16 %v239
    %v920 = vunpack.c.l.b16 %v240
    %v921 = vunpack.c.h.b16 %v240
    %v922 = vunpack.c.l.b16 %v241
    %v923 = vunpack.c.h.b16 %v241
    %v924 = vunpack.c.l.b16 %v242
    %v925 = vunpack.c.h.b16 %v242
    %v926 = vunpack.c.l.b16 %v243
    %v927 = vunpack.c.h.b16 %v243
    %v928 = vunpack.c.l.b16 %v244
    %v929 = vunpack.c.h.b16 %v244
    %v930 = vunpack.c.l.b16 %v245
    %v931 = vunpack.c.h.b16 %v245
    %v932 = vunpack.c.l.b16 %v246
    %v933 = vunpack.c.h.b16 %v246
    %v934 = vunpack.c.l.b16 %v247
    %v935 = vunpack.c.h.b16 %v247
    %v936 = vunpack.c.l.b16 %v248
    %v937 = vunpack.c.h.b16 %v248
    %v938 = vunpack.c.l.b16 %v249
    %v939 = vunpack.c.h.b16 %v249
    %v940 = vunpack.c.l.b16 %v250
    %v941 = vunpack.c.h.b16 %v250
    %v942 = vunpack.c.l.b16 %v251
    %v943 = vunpack.c.h.b16 %v251
    %v944 = vunpack.c.l.b16 %v252
    %v945 = vunpack.c.h.b16 %v252
    %v946 = vunpack.c.l.b16 %v253
    %v947 = vunpack.c.h.b16 %v253
    %v948 = vunpack.c.l.b16 %v254
    %v949 = vunpack.c.h.b16 %v254
    %v950 = vunpack.c.l.b16 %v255
    %v951 = vunpack.c.h.b16 %v255
    %v952 = vunpack.c.l.b16 %v256
    %v953 = vunpack.c.h.b16 %v256
    %v954 = vunpack.c.l.b16 %v257
    %v955 = vunpack.c.h.b16 %v257
    %v956 = vunpack.c.l.b16 %v258
    %v957 = vunpack.c.h.b16 %v258
    %v958 = vunpack.c.l.b16 %v259
    %v959 = vunpack.c.h.b16 %v259
    %v960 = vunpack.c.l.b16 %v260
    %v961 = vunpack.c.h.b16 %v260
    %v962 = vunpack.c.l.b16 %v261
    %v963 = vunpack.c.h.b16 %v261
    %v964 = vunpack.c.l.b16 %v262
    %v965 = vunpack.c.h.b16 %v262
    %v966 = vunpack.c.l.b16 %v263
    %v967 = vunpack.c.h.b16 %v263
    %v968 = vunpack.c.l.b16 %v264
    %v969 = vunpack.c.h.b16 %v264
    %v970 = vunpack.c.l.b16 %v265
    %v971 = vunpack.c.h.b16 %v265
    %v972 = vunpack.c.l.b16 %v266
    %v973 = vunpack.c.h.b16 %v266
    %v974 = vunpack.c.l.b16 %v267
    %v975 = vunpack.c.h.b16 %v267
    %v976 = vunpack.c.l.b16 %v268
    %v977 = vunpack.c.h.b16 %v268
    %v978 = vunpack.c.l.b16 %v269
    %v979 = vunpack.c.h.b16 %v269
    %v980 = vunpack.c.l.b16 %v270
    %v981 = vunpack.c.h.b16 %v270
    %v982 = vunpack.c.l.b16 %v271
    %v983 = vunpack.c.h.b16 %v271
    %v984 = vunpack.c.l.b16 %v272
    %v985 = vunpack.c.h.b16 %v272
    %v986 = vunpack.c.l.b16 %v273
    %v987 = vunpack.c.h.b16 %v273
    %v988 = vunpack.c.l.b16 %v274
    %v989 = vunpack.c.h.b16 %v274
    %v990 = vunpack.c.l.b16 %v275
    %v991 = vunpack.c.h.b16 %v275
    %v992 = vunpack.c.l.b16 %v276
    %v993 = vunpack.c.h.b16 %v276
    %v994 = vunpack.c.l.b16 %v277
    %v995 = vunpack.c.h.b16 %v277
    %v996 = vunpack.c.l.b16 %v278
    %v997 = vunpack.c.h.b16 %v278
    %v998 = vunpack.c.l.b16 %v279
    %v999 = vunpack.c.h.b16 %v279
    %v1000 = vunpack.c.l.b16 %v280
    %v1001 = vunpack.c.h.b16 %v280
    %v1002 = vunpack.c.l.b16 %v281
    %v1003 = vunpack.c.h.b16 %v281
    %v1004 = vunpack.c.l.b16 %v282
    %v1005 = vunpack.c.h.b16 %v282
    %v1006 = vunpack.c.l.b16 %v283
    %v1007 = vunpack.c.h.b16 %v283
    %v1008 = vunpack.c.l.b16 %v284
    %v1009 = vunpack.c.h.b16 %v284
    %v1010 = vunpack.c.l.b16 %v285
    %v1011 = vunpack.c.h.b16 %v285
    %v1012 = vunpack.c.l.b16 %v286
    %v1013 = vunpack.c.h.b16 %v286
    %v1014 = vunpack.c.l.b16 %v287
    %v1015 = vunpack.c.h.b16 %v287
    %v1016 = vunpack.c.l.b16 %v288
    %v1017 = vunpack.c.h.b16 %v288
    %v1018 = vunpack.c.l.b16 %v289
    %v1019 = vunpack.c.h.b16 %v289
    %v1020 = vunpack.c.l.b16 %v290
    %v1021 = vunpack.c.h.b16 %v290
    %v1022 = vunpack.c.l.b16 %v291
    %v1023 = vunpack.c.h.b16 %v291
    %v1024 = vunpack.c.l.b16 %v292
    %v1025 = vunpack.c.h.b16 %v292
    %v1026 = vunpack.c.l.b16 %v293
    %v1027 = vunpack.c.h.b16 %v293
    %v1028 = vunpack.c.l.b16 %v294
    %v1029 = vunpack.c.h.b16 %v294
    %v1030 = vunpack.c.l.b16 %v295
    %v1031 = vunpack.c.h.b16 %v295
    %v1032 = vunpack.c.l.b16 %v296
    %v1033 = vunpack.c.h.b16 %v296
    %v1034 = vunpack.c.l.b16 %v297
    %v1035 = vunpack.c.h.b16 %v297
    %v1036 = vunpack.c.l.b16 %v298
    %v1037 = vunpack.c.h.b16 %v298
    %v1038 = vunpack.c.l.b16 %v299
    %v1039 = vunpack.c.h.b16 %v299
    %v1040 = vunpack.c.l.b16 %v300
    %v1041 = vunpack.c.h.b16 %v300
    %v1042 = vunpack.c.l.b16 %v301
    %v1043 = vunpack.c.h.b16 %v301
    %v1044 = vunpack.c.l.b16 %v302
    %v1045 = vunpack.c.h.b16 %v302
    %v1046 = vunpack.c.l.b16 %v303
    %v1047 = vunpack.c.h.b16 %v303
    %v1048 = vunpack.c.l.b16 %v304
    %v1049 = vunpack.c.h.b16 %v304
    %v1050 = vunpack.c.l.b16 %v305
    %v1051 = vunpack.c.h.b16 %v305
    %v1052 = vunpack.c.l.b16 %v306
    %v1053 = vunpack.c.h.b16 %v306
    %v1054 = vunpack.c.l.b16 %v307
    %v1055 = vunpack.c.h.b16 %v307
    %v1056 = vunpack.c.l.b16 %v308
    %v1057 = vunpack.c.h.b16 %v308
    %v1058 = vunpack.c.l.b16 %v309
    %v1059 = vunpack.c.h.b16 %v309
    %v1060 = vunpack.c.l.b16 %v310
    %v1061 = vunpack.c.h.b16 %v310
    %v1062 = vunpack.c.l.b16 %v311
    %v1063 = vunpack.c.h.b16 %v311
    %v1064 = vunpack.c.l.b16 %v312
    %v1065 = vunpack.c.h.b16 %v312
    %v1066 = vunpack.c.l.b16 %v313
    %v1067 = vunpack.c.h.b16 %v313
    %v1068 = vunpack.c.l.b16 %v314
    %v1069 = vunpack.c.h.b16 %v314
    %v1070 = vunpack.c.l.b16 %v315
    %v1071 = vunpack.c.h.b16 %v315
    %v1072 = vunpack.c.l.b16 %v316
    %v1073 = vunpack.c.h.b16 %v316
    %v1074 = vunpack.c.l.b16 %v317
    %v1075 = vunpack.c.h.b16 %v317
    %v1076 = vunpack.c.l.b16 %v318
    %v1077 = vunpack.c.h.b16 %v318
    %v1078 = vunpack.c.l.b16 %v319
    %v1079 = vunpack.c.h.b16 %v319
    %v1080 = vunpack.c.l.b16 %v320
    %v1081 = vunpack.c.h.b16 %v320
    %v1082 = vunpack.c.l.b16 %v321
    %v1083 = vunpack.c.h.b16 %v321
    %v1084 = vunpack.c.l.b16 %v322
    %v1085 = vunpack.c.h.b16 %v322
    %v1086 = vunpack.c.l.b16 %v323
    %v1087 = vunpack.c.h.b16 %v323
    %v1088 = vunpack.c.l.b16 %v324
    %v1089 = vunpack.c.h.b16 %v324
    %v1090 = vunpack.c.l.b16 %v325
    %v1091 = vunpack.c.h.b16 %v325
    %v1092 = vunpack.c.l.b16 %v326
    %v1093 = vunpack.c.h.b16 %v326
    %v1094 = vunpack.c.l.b16 %v327
    %v1095 = vunpack.c.h.b16 %v327
    %v1096 = vunpack.c.l.b16 %v328
    %v1097 = vunpack.c.h.b16 %v328
    %v1098 = vunpack.c.l.b16 %v329
    %v1099 = vunpack.c.h.b16 %v329
    %v1100 = vunpack.c.l.b16 %v330
    %v1101 = vunpack.c.h.b16 %v330
    %v1102 = vunpack.c.l.b16 %v331
    %v1103 = vunpack.c.h.b16 %v331
    %v1104 = vunpack.c.l.b16 %v332
    %v1105 = vunpack.c.h.b16 %v332
    %v1106 = vunpack.c.l.b16 %v333
    %v1107 = vunpack.c.h.b16 %v333
    %v1108 = vunpack.c.l.b16 %v334
    %v1109 = vunpack.c.h.b16 %v334
    %v1110 = vunpack.c.l.b16 %v335
    %v1111 = vunpack.c.h.b16 %v335
    %v1112 = vunpack.c.l.b16 %v336
    %v1113 = vunpack.c.h.b16 %v336
    %v1114 = vunpack.c.l.b16 %v337
    %v1115 = vunpack.c.h.b16 %v337
    %v1116 = vunpack.c.l.b16 %v338
    %v1117 = vunpack.c.h.b16 %v338
    %v1118 = vunpack.c.l.b16 %v339
    %v1119 = vunpack.c.h.b16 %v339
    %v1120 = vunpack.c.l.b16 %v340
    %v1121 = vunpack.c.h.b16 %v340
    %v1122 = vunpack.c.l.b16 %v341
    %v1123 = vunpack.c.h.b16 %v341
    %v1124 = vunpack.c.l.b16 %v342
    %v1125 = vunpack.c.h.b16 %v342
    %v1126 = vunpack.c.l.b16 %v343
    %v1127 = vunpack.c.h.b16 %v343
    %v1128 = vunpack.c.l.b16 %v344
    %v1129 = vunpack.c.h.b16 %v344
    %v1130 = vunpack.c.l.b16 %v345
    %v1131 = vunpack.c.h.b16 %v345
    %v1132 = vunpack.c.l.b16 %v346
    %v1133 = vunpack.c.h.b16 %v346
    %v1134 = vunpack.c.l.b16 %v347
    %v1135 = vunpack.c.h.b16 %v347
    %v1136 = vunpack.c.l.b16 %v348
    %v1137 = vunpack.c.h.b16 %v348
    %v1138 = vunpack.c.l.b16 %v349
    %v1139 = vunpack.c.h.b16 %v349
    %v1140 = vpack.c.b16 %v632, %v628
    %v1141 = vpack.c.b16 %v633, %v629
    %v1142 = vpack.c.b16 %v634, %v630
    %v1143 = vpack.c.b16 %v635, %v631
    %v1144 = vpack.c.b16 %v640, %v636
    %v1145 = vpack.c.b16 %v641, %v637
    %v1146 = vpack.c.b16 %v642, %v638
    %v1147 = vpack.c.b16 %v643, %v639
    %v1148 = vpack.c.b16 %v648, %v644
    %v1149 = vpack.c.b16 %v649, %v645
    %v1150 = vpack.c.b16 %v650, %v646
    %v1151 = vpack.c.b16 %v651, %v647
    %v1152 = vpack.c.b16 %v656, %v652
    %v1153 = vpack.c.b16 %v657, %v653
    %v1154 = vpack.c.b16 %v658, %v654
    %v1155 = vpack.c.b16 %v659, %v655
    %v1156 = vpack.c.b16 %v664, %v660
    %v1157 = vpack.c.b16 %v665, %v661
    %v1158 = vpack.c.b16 %v666, %v662
    %v1159 = vpack.c.b16 %v667, %v663
    %v1160 = vpack.c.b16 %v672, %v668
    %v1161 = vpack.c.b16 %v673, %v669
    %v1162 = vpack.c.b16 %v674, %v670
    %v1163 = vpack.c.b16 %v675, %v671
    %v1164 = vpack.c.b16 %v680, %v676
    %v1165 = vpack.c.b16 %v681, %v677
    %v1166 = vpack.c.b16 %v682, %v678
    %v1167 = vpack.c.b16 %v683, %v679
    %v1168 = vpack.c.b16 %v688, %v684
    %v1169 = vpack.c.b16 %v689, %v685
    %v1170 = vpack.c.b16 %v690, %v686
    %v1171 = vpack.c.b16 %v691, %v687
    %v1172 = vpack.c.b16 %v696, %v692
    %v1173 = vpack.c.b16 %v697, %v693
    %v1174 = vpack.c.b16 %v698, %v694
    %v1175 = vpack.c.b16 %v699, %v695
    %v1176 = vpack.c.b16 %v704, %v700
    %v1177 = vpack.c.b16 %v705, %v701
    %v1178 = vpack.c.b16 %v706, %v702
    %v1179 = vpack.c.b16 %v707, %v703
    %v1180 = vpack.c.b16 %v712, %v708
    %v1181 = vpack.c.b16 %v713, %v709
    %v1182 = vpack.c.b16 %v714, %v710
    %v1183 = vpack.c.b16 %v715, %v711
    %v1184 = vpack.c.b16 %v720, %v716
    %v1185 = vpack.c.b16 %v721, %v717
    %v1186 = vpack.c.b16 %v722, %v718
    %v1187 = vpack.c.b16 %v723, %v719
    %v1188 = vpack.c.b16 %v728, %v724
    %v1189 = vpack.c.b16 %v729, %v725
    %v1190 = vpack.c.b16 %v730, %v726
    %v1191 = vpack.c.b16 %v731, %v727
    %v1192 = vpack.c.b16 %v736, %v732
    %v1193 = vpack.c.b16 %v737, %v733
    %v1194 = vpack.c.b16 %v738, %v734
    %v1195 = vpack.c.b16 %v739, %v735
    %v1196 = vpack.c.b16 %v744, %v740
    %v1197 = vpack.c.b16 %v745, %v741
    %v1198 = vpack.c.b16 %v746, %v742
    %v1199 = vpack.c.b16 %v747, %v743
    %v1200 = vpack.c.b16 %v752, %v748
    %v1201 = vpack.c.b16 %v753, %v749
    %v1202 = vpack.c.b16 %v754, %v750
    %v1203 = vpack.c.b16 %v755, %v751
    %v1204 = vpack.c.b16 %v760, %v756
    %v1205 = vpack.c.b16 %v761, %v757
    %v1206 = vpack.c.b16 %v762, %v758
    %v1207 = vpack.c.b16 %v763, %v759
    %v1208 = vpack.c.b16 %v768, %v764
    %v1209 = vpack.c.b16 %v769, %v765
    %v1210 = vpack.c.b16 %v770, %v766
    %v1211 = vpack.c.b16 %v771, %v767
    %v1212 = vpack.c.b16 %v776, %v772
    %v1213 = vpack.c.b16 %v777, %v773
    %v1214 = vpack.c.b16 %v778, %v774
    %v1215 = vpack.c.b16 %v779, %v775
    %v1216 = vpack.c.b16 %v784, %v780
    %v1217 = vpack.c.b16 %v785, %v781
    %v1218 = vpack.c.b16 %v786, %v782
    %v1219 = vpack.c.b16 %v787, %v783
    %v1220 = vpack.c.b16 %v792, %v788
    %v1221 = vpack.c.b16 %v793, %v789
    %v1222 = vpack.c.b16 %v794, %v790
    %v1223 = vpack.c.b16 %v795, %v791
    %v1224 = vpack.c.b16 %v800, %v796
    %v1225 = vpack.c.b16 %v801, %v797
    %v1226 = vpack.c.b16 %v802, %v798
    %v1227 = vpack.c.b16 %v803, %v799
    %v1228 = vpack.c.b16 %v808, %v804
    %v1229 = vpack.c.b16 %v809, %v805
    %v1230 = vpack.c.b16 %v810, %v806
    %v1231 = vpack.c.b16 %v811, %v807
    %v1232 = vpack.c.b16 %v816, %v812
    %v1233 = vpack.c.b16 %v817, %v813
    %v1234 = vpack.c.b16 %v818, %v814
    %v1235 = vpack.c.b16 %v819, %v815
    %v1236 = vpack.c.b16 %v824, %v820
    %v1237 = vpack.c.b16 %v825, %v821
    %v1238 = vpack.c.b16 %v826, %v822
    %v1239 = vpack.c.b16 %v827, %v823
    %v1240 = vpack.c.b16 %v832, %v828
    %v1241 = vpack.c.b16 %v833, %v829
    %v1242 = vpack.c.b16 %v834, %v830
    %v1243 = vpack.c.b16 %v835, %v831
    %v1244 = vpack.c.b16 %v840, %v836
    %v1245 = vpack.c.b16 %v841, %v837
    %v1246 = vpack.c.b16 %v842, %v838
    %v1247 = vpack.c.b16 %v843, %v839
    %v1248 = vpack.c.b16 %v848, %v844
    %v1249 = vpack.c.b16 %v849, %v845
    %v1250 = vpack.c.b16 %v850, %v846
    %v1251 = vpack.c.b16 %v851, %v847
    %v1252 = vpack.c.b16 %v856, %v852
    %v1253 = vpack.c.b16 %v857, %v853
    %v1254 = vpack.c.b16 %v858, %v854
    %v1255 = vpack.c.b16 %v859, %v855
    %v1256 = vpack.c.b16 %v864, %v860
    %v1257 = vpack.c.b16 %v865, %v861
    %v1258 = vpack.c.b16 %v866, %v862
    %v1259 = vpack.c.b16 %v867, %v863
    %v1260 = vpack.c.b16 %v872, %v868
    %v1261 = vpack.c.b16 %v873, %v869
    %v1262 = vpack.c.b16 %v874, %v870
    %v1263 = vpack.c.b16 %v875, %v871
    %v1264 = vpack.c.b16 %v880, %v876
    %v1265 = vpack.c.b16 %v881, %v877
    %v1266 = vpack.c.b16 %v882, %v878
    %v1267 = vpack.c.b16 %v883, %v879
    %v1268 = vpack.c.b16 %v888, %v884
    %v1269 = vpack.c.b16 %v889, %v885
    %v1270 = vpack.c.b16 %v890, %v886
    %v1271 = vpack.c.b16 %v891, %v887
    %v1272 = vpack.c.b16 %v896, %v892
    %v1273 = vpack.c.b16 %v897, %v893
    %v1274 = vpack.c.b16 %v898, %v894
    %v1275 = vpack.c.b16 %v899, %v895
    %v1276 = vpack.c.b16 %v904, %v900
    %v1277 = vpack.c.b16 %v905, %v901
    %v1278 = vpack.c.b16 %v906, %v902
    %v1279 = vpack.c.b16 %v907, %v903
    %v1280 = vpack.c.b16 %v912, %v908
    %v1281 = vpack.c.b16 %v913, %v909
    %v1282 = vpack.c.b16 %v914, %v910
    %v1283 = vpack.c.b16 %v915, %v911
    %v1284 = vpack.c.b16 %v920, %v916
    %v1285 = vpack.c.b16 %v921, %v917
    %v1286 = vpack.c.b16 %v922, %v918
    %v1287 = vpack.c.b16 %v923, %v919
    %v1288 = vpack.c.b16 %v928, %v924
    %v1289 = vpack.c.b16 %v929, %v925
    %v1290 = vpack.c.b16 %v930, %v926
    %v1291 = vpack.c.b16 %v931, %v927
    %v1292 = vpack.c.b16 %v936, %v932
    %v1293 = vpack.c.b16 %v937, %v933
    %v1294 = vpack.c.b16 %v938, %v934
    %v1295 = vpack.c.b16 %v939, %v935
    %v1296 = vpack.c.b16 %v944, %v940
    %v1297 = vpack.c.b16 %v945, %v941
    %v1298 = vpack.c.b16 %v946, %v942
    %v1299 = vpack.c.b16 %v947, %v943
    %v1300 = vpack.c.b16 %v952, %v948
    %v1301 = vpack.c.b16 %v953, %v949
    %v1302 = vpack.c.b16 %v954, %v950
    %v1303 = vpack.c.b16 %v955, %v951
    %v1304 = vpack.c.b16 %v960, %v956
    %v1305 = vpack.c.b16 %v961, %v957
    %v1306 = vpack.c.b16 %v962, %v958
    %v1307 = vpack.c.b16 %v963, %v959
    %v1308 = vpack.c.b16 %v968, %v964
    %v1309 = vpack.c.b16 %v969, %v965
    %v1310 = vpack.c.b16 %v970, %v966
    %v1311 = vpack.c.b16 %v971, %v967
    %v1312 = vpack.c.b16 %v976, %v972
    %v1313 = vpack.c.b16 %v977, %v973
    %v1314 = vpack.c.b16 %v978, %v974
    %v1315 = vpack.c.b16 %v979, %v975
    %v1316 = vpack.c.b16 %v984, %v980
    %v1317 = vpack.c.b16 %v985, %v981
    %v1318 = vpack.c.b16 %v986, %v982
    %v1319 = vpack.c.b16 %v987, %v983
    %v1320 = vpack.c.b16 %v992, %v988
    %v1321 = vpack.c.b16 %v993, %v989
    %v1322 = vpack.c.b16 %v994, %v990
    %v1323 = vpack.c.b16 %v995, %v991
    %v1324 = vpack.c.b16 %v1000, %v996
    %v1325 = vpack.c.b16 %v1001, %v997
    %v1326 = vpack.c.b16 %v1002, %v998
    %v1327 = vpack.c.b16 %v1003, %v999
    %v1328 = vpack.c.b16 %v1008, %v1004
    %v1329 = vpack.c.b16 %v1009, %v1005
    %v1330 = vpack.c.b16 %v1010, %v1006
    %v1331 = vpack.c.b16 %v1011, %v1007
    %v1332 = vpack.c.b16 %v1016, %v1012
    %v1333 = vpack.c.b16 %v1017, %v1013
    %v1334 = vpack.c.b16 %v1018, %v1014
    %v1335 = vpack.c.b16 %v1019, %v1015
    %v1336 = vpack.c.b16 %v1024, %v1020
    %v1337 = vpack.c.b16 %v1025, %v1021
    %v1338 = vpack.c.b16 %v1026, %v1022
    %v1339 = vpack.c.b16 %v1027, %v1023
    %v1340 = vpack.c.b16 %v1032, %v1028
    %v1341 = vpack.c.b16 %v1033, %v1029
    %v1342 = vpack.c.b16 %v1034, %v1030
    %v1343 = vpack.c.b16 %v1035, %v1031
    %v1344 = vpack.c.b16 %v1040, %v1036
    %v1345 = vpack.c.b16 %v1041, %v1037
    %v1346 = vpack.c.b16 %v1042, %v1038
    %v1347 = vpack.c.b16 %v1043, %v1039
    %v1348 = vpack.c.b16 %v1048, %v1044
    %v1349 = vpack.c.b16 %v1049, %v1045
    %v1350 = vpack.c.b16 %v1050, %v1046
    %v1351 = vpack.c.b16 %v1051, %v1047
    %v1352 = vpack.c.b16 %v1056, %v1052
    %v1353 = vpack.c.b16 %v1057, %v1053
    %v1354 = vpack.c.b16 %v1058, %v1054
    %v1355 = vpack.c.b16 %v1059, %v1055
    %v1356 = vpack.c.b16 %v1064, %v1060
    %v1357 = vpack.c.b16 %v1065, %v1061
    %v1358 = vpack.c.b16 %v1066, %v1062
    %v1359 = vpack.c.b16 %v1067, %v1063
    %v1360 = vpack.c.b16 %v1072, %v1068
    %v1361 = vpack.c.b16 %v1073, %v1069
    %v1362 = vpack.c.b16 %v1074, %v1070
    %v1363 = vpack.c.b16 %v1075, %v1071
    %v1364 = vpack.c.b16 %v1080, %v1076
    %v1365 = vpack.c.b16 %v1081, %v1077
    %v1366 = vpack.c.b16 %v1082, %v1078
    %v1367 = vpack.c.b16 %v1083, %v1079
    %v1368 = vpack.c.b16 %v1088, %v1084
    %v1369 = vpack.c.b16 %v1089, %v1085
    %v1370 = vpack.c.b16 %v1090, %v1086
    %v1371 = vpack.c.b16 %v1091, %v1087
    %v1372 = vpack.c.b16 %v1096, %v1092
    %v1373 = vpack.c.b16 %v1097, %v1093
    %v1374 = vpack.c.b16 %v1098, %v1094
    %v1375 = vpack.c.b16 %v1099, %v1095
    %v1376 = vpack.c.b16 %v1104, %v1100
    %v1377 = vpack.c.b16 %v1105, %v1101
    %v1378 = vpack.c.b16 %v1106, %v1102
    %v1379 = vpack.c.b16 %v1107, %v1103
    %v1380 = vpack.c.b16 %v1112, %v1108
    %v1381 = vpack.c.b16 %v1113, %v1109
    %v1382 = vpack.c.b16 %v1114, %v1110
    %v1383 = vpack.c.b16 %v1115, %v1111
    %v1384 = vpack.c.b16 %v1120, %v1116
    %v1385 = vpack.c.b16 %v1121, %v1117
    %v1386 = vpack.c.b16 %v1122, %v1118
    %v1387 = vpack.c.b16 %v1123, %v1119
    %v1388 = vpack.c.b16 %v1128, %v1124
    %v1389 = vpack.c.b16 %v1129, %v1125
    %v1390 = vpack.c.b16 %v1130, %v1126
    %v1391 = vpack.c.b16 %v1131, %v1127
    %v1392 = vpack.c.b16 %v1136, %v1132
    %v1393 = vpack.c.b16 %v1137, %v1133
    %v1394 = vpack.c.b16 %v1138, %v1134
    %v1395 = vpack.c.b16 %v1139, %v1135
    %1652 = vmatprep.subr.bf16.mxu0 %v1169
    %1653 = vmatpush1.bf16.msra.mxu0 %v1168
    %1654 = vmatprep.subr.bf16.mxu0 %v1165
    %1655 = vmatpush1.bf16.msra.mxu0 %v1164
    %1656 = vmatprep.subr.bf16.mxu0 %v1161
    %1657 = vmatpush1.bf16.msra.mxu0 %v1160
    %1658 = vmatprep.subr.bf16.mxu0 %v1157
    %1659 = vmatpush1.bf16.msra.mxu0 %v1156
    %1660 = vmatprep.subr.bf16.mxu0 %v1153
    %1661 = vmatpush1.bf16.msra.mxu0 %v1152
    %1662 = vmatprep.subr.bf16.mxu0 %v1149
    %1663 = vmatpush1.bf16.msra.mxu0 %v1148
    %1664 = vmatprep.subr.bf16.mxu0 %v1145
    %1665 = vmatpush1.bf16.msra.mxu0 %v1144
    %1666 = vmatprep.subr.bf16.mxu0 %v1141
    %1667 = vmatpush1.bf16.msra.mxu0 %v1140
    %1668 = vmatprep.subr.bf16.mxu0 %v1201
    %1669 = vmatpush2.bf16.msra.mxu0 %v1200
    %1670 = vmatprep.subr.bf16.mxu0 %v1197
    %1671 = vmatpush2.bf16.msra.mxu0 %v1196
    %1672 = vmatprep.subr.bf16.mxu0 %v1193
    %1673 = vmatpush2.bf16.msra.mxu0 %v1192
    %1674 = vmatprep.subr.bf16.mxu0 %v1189
    %1675 = vmatpush2.bf16.msra.mxu0 %v1188
    %1676 = vmatprep.subr.bf16.mxu0 %v1185
    %1677 = vmatpush2.bf16.msra.mxu0 %v1184
    %1678 = vmatprep.subr.bf16.mxu0 %v1181
    %1679 = vmatpush2.bf16.msra.mxu0 %v1180
    %1680 = vmatprep.subr.bf16.mxu0 %v1177
    %1681 = vmatpush2.bf16.msra.mxu0 %v1176
    %1682 = vmatprep.subr.bf16.mxu0 %v1173
    %1683 = vmatpush2.bf16.msra.mxu0 %v1172
    %1684 = vmatprep.mubr.bf16.mxu0 %v87
    %1685 = vmatmul.mubr.bf16.gmra.mxu0 %v86
    %v1686 = vpop.f32.mrf.mxu0
    %v1687 = vadd.f32 %v355, %v1686
    %v1688 = vpop.f32.mrf.mxu0
    %v1689 = vadd.f32 %v359, %v1688
    %v1690 = vpop.f32.mrf.mxu0
    %v1691 = vpop.f32.mrf.mxu0
    %1692 = vdwg.mxu0
    %1693 = vmatprep.subr.bf16.mxu0 %v1233
    %1694 = vmatpush1.bf16.msra.mxu0 %v1232
    %1695 = vmatprep.subr.bf16.mxu0 %v1229
    %1696 = vmatpush1.bf16.msra.mxu0 %v1228
    %1697 = vmatprep.subr.bf16.mxu0 %v1225
    %1698 = vmatpush1.bf16.msra.mxu0 %v1224
    %1699 = vmatprep.subr.bf16.mxu0 %v1221
    %1700 = vmatpush1.bf16.msra.mxu0 %v1220
    %1701 = vmatprep.subr.bf16.mxu0 %v1217
    %1702 = vmatpush1.bf16.msra.mxu0 %v1216
    %1703 = vmatprep.subr.bf16.mxu0 %v1213
    %1704 = vmatpush1.bf16.msra.mxu0 %v1212
    %1705 = vmatprep.subr.bf16.mxu0 %v1209
    %1706 = vmatpush1.bf16.msra.mxu0 %v1208
    %1707 = vmatprep.subr.bf16.mxu0 %v1205
    %1708 = vmatpush1.bf16.msra.mxu0 %v1204
    %1709 = vmatprep.subr.bf16.mxu0 %v1265
    %1710 = vmatpush2.bf16.msra.mxu0 %v1264
    %1711 = vmatprep.subr.bf16.mxu0 %v1261
    %1712 = vmatpush2.bf16.msra.mxu0 %v1260
    %1713 = vmatprep.subr.bf16.mxu0 %v1257
    %1714 = vmatpush2.bf16.msra.mxu0 %v1256
    %1715 = vmatprep.subr.bf16.mxu0 %v1253
    %1716 = vmatpush2.bf16.msra.mxu0 %v1252
    %1717 = vmatprep.subr.bf16.mxu0 %v1249
    %1718 = vmatpush2.bf16.msra.mxu0 %v1248
    %1719 = vmatprep.subr.bf16.mxu0 %v1245
    %1720 = vmatpush2.bf16.msra.mxu0 %v1244
    %1721 = vmatprep.subr.bf16.mxu0 %v1241
    %1722 = vmatpush2.bf16.msra.mxu0 %v1240
    %1723 = vmatprep.subr.bf16.mxu0 %v1237
    %1724 = vmatpush2.bf16.msra.mxu0 %v1236
    %1725 = vmatprep.mubr.bf16.mxu0 %v89
    %1726 = vmatmul.mubr.bf16.gmra.mxu0 %v88
    %v1727 = vpop.f32.mrf.mxu0
    %v1728 = vadd.f32 %v1687, %v1727
    %v1729 = vpop.f32.mrf.mxu0
    %v1730 = vadd.f32 %v1689, %v1729
    %v1731 = vpop.f32.mrf.mxu0
    %v1732 = vpop.f32.mrf.mxu0
    %1733 = vdwg.mxu0
    %1734 = vmatprep.subr.bf16.mxu0 %v1297
    %1735 = vmatpush1.bf16.msra.mxu0 %v1296
    %1736 = vmatprep.subr.bf16.mxu0 %v1293
    %1737 = vmatpush1.bf16.msra.mxu0 %v1292
    %1738 = vmatprep.subr.bf16.mxu0 %v1289
    %1739 = vmatpush1.bf16.msra.mxu0 %v1288
    %1740 = vmatprep.subr.bf16.mxu0 %v1285
    %1741 = vmatpush1.bf16.msra.mxu0 %v1284
    %1742 = vmatprep.subr.bf16.mxu0 %v1281
    %1743 = vmatpush1.bf16.msra.mxu0 %v1280
    %1744 = vmatprep.subr.bf16.mxu0 %v1277
    %1745 = vmatpush1.bf16.msra.mxu0 %v1276
    %1746 = vmatprep.subr.bf16.mxu0 %v1273
    %1747 = vmatpush1.bf16.msra.mxu0 %v1272
    %1748 = vmatprep.subr.bf16.mxu0 %v1269
    %1749 = vmatpush1.bf16.msra.mxu0 %v1268
    %1750 = vmatprep.subr.bf16.mxu0 %v1329
    %1751 = vmatpush2.bf16.msra.mxu0 %v1328
    %1752 = vmatprep.subr.bf16.mxu0 %v1325
    %1753 = vmatpush2.bf16.msra.mxu0 %v1324
    %1754 = vmatprep.subr.bf16.mxu0 %v1321
    %1755 = vmatpush2.bf16.msra.mxu0 %v1320
    %1756 = vmatprep.subr.bf16.mxu0 %v1317
    %1757 = vmatpush2.bf16.msra.mxu0 %v1316
    %1758 = vmatprep.subr.bf16.mxu0 %v1313
    %1759 = vmatpush2.bf16.msra.mxu0 %v1312
    %1760 = vmatprep.subr.bf16.mxu0 %v1309
    %1761 = vmatpush2.bf16.msra.mxu0 %v1308
    %1762 = vmatprep.subr.bf16.mxu0 %v1305
    %1763 = vmatpush2.bf16.msra.mxu0 %v1304
    %1764 = vmatprep.subr.bf16.mxu0 %v1301
    %1765 = vmatpush2.bf16.msra.mxu0 %v1300
    %1766 = vmatprep.mubr.bf16.mxu0 %v91
    %1767 = vmatmul.mubr.bf16.gmra.mxu0 %v90
    %v1768 = vpop.f32.mrf.mxu0
    %v1769 = vadd.f32 %v1728, %v1768
    %v1770 = vpop.f32.mrf.mxu0
    %v1771 = vadd.f32 %v1730, %v1770
    %v1772 = vpop.f32.mrf.mxu0
    %v1773 = vpop.f32.mrf.mxu0
    %1774 = vdwg.mxu0
    %1775 = vmatprep.subr.bf16.mxu0 %v1361
    %1776 = vmatpush1.bf16.msra.mxu0 %v1360
    %1777 = vmatprep.subr.bf16.mxu0 %v1357
    %1778 = vmatpush1.bf16.msra.mxu0 %v1356
    %1779 = vmatprep.subr.bf16.mxu0 %v1353
    %1780 = vmatpush1.bf16.msra.mxu0 %v1352
    %1781 = vmatprep.subr.bf16.mxu0 %v1349
    %1782 = vmatpush1.bf16.msra.mxu0 %v1348
    %1783 = vmatprep.subr.bf16.mxu0 %v1345
    %1784 = vmatpush1.bf16.msra.mxu0 %v1344
    %1785 = vmatprep.subr.bf16.mxu0 %v1341
    %1786 = vmatpush1.bf16.msra.mxu0 %v1340
    %1787 = vmatprep.subr.bf16.mxu0 %v1337
    %1788 = vmatpush1.bf16.msra.mxu0 %v1336
    %1789 = vmatprep.subr.bf16.mxu0 %v1333
    %1790 = vmatpush1.bf16.msra.mxu0 %v1332
    %1791 = vmatprep.subr.bf16.mxu0 %v1393
    %1792 = vmatpush2.bf16.msra.mxu0 %v1392
    %1793 = vmatprep.subr.bf16.mxu0 %v1389
    %1794 = vmatpush2.bf16.msra.mxu0 %v1388
    %1795 = vmatprep.subr.bf16.mxu0 %v1385
    %1796 = vmatpush2.bf16.msra.mxu0 %v1384
    %1797 = vmatprep.subr.bf16.mxu0 %v1381
    %1798 = vmatpush2.bf16.msra.mxu0 %v1380
    %1799 = vmatprep.subr.bf16.mxu0 %v1377
    %1800 = vmatpush2.bf16.msra.mxu0 %v1376
    %1801 = vmatprep.subr.bf16.mxu0 %v1373
    %1802 = vmatpush2.bf16.msra.mxu0 %v1372
    %1803 = vmatprep.subr.bf16.mxu0 %v1369
    %1804 = vmatpush2.bf16.msra.mxu0 %v1368
    %1805 = vmatprep.subr.bf16.mxu0 %v1365
    %1806 = vmatpush2.bf16.msra.mxu0 %v1364
    %1807 = vmatprep.mubr.bf16.mxu0 %v93
    %1808 = vmatmul.mubr.bf16.gmra.mxu0 %v92
    %v1809 = vpop.f32.mrf.mxu0
    %v1810 = vadd.f32 %v1769, %v1809
    %v1811 = vpop.f32.mrf.mxu0
    %v1812 = vadd.f32 %v1771, %v1811
    %v1813 = vpop.f32.mrf.mxu0
    %v1814 = vpop.f32.mrf.mxu0
    %1815 = vdwg.mxu0
    %1816 = vmatprep.subr.bf16.mxu0 %v1171
    %1817 = vmatpush1.bf16.msra.mxu0 %v1170
    %1818 = vmatprep.subr.bf16.mxu0 %v1167
    %1819 = vmatpush1.bf16.msra.mxu0 %v1166
    %1820 = vmatprep.subr.bf16.mxu0 %v1163
    %1821 = vmatpush1.bf16.msra.mxu0 %v1162
    %1822 = vmatprep.subr.bf16.mxu0 %v1159
    %1823 = vmatpush1.bf16.msra.mxu0 %v1158
    %1824 = vmatprep.subr.bf16.mxu0 %v1155
    %1825 = vmatpush1.bf16.msra.mxu0 %v1154
    %1826 = vmatprep.subr.bf16.mxu0 %v1151
    %1827 = vmatpush1.bf16.msra.mxu0 %v1150
    %1828 = vmatprep.subr.bf16.mxu0 %v1147
    %1829 = vmatpush1.bf16.msra.mxu0 %v1146
    %1830 = vmatprep.subr.bf16.mxu0 %v1143
    %1831 = vmatpush1.bf16.msra.mxu0 %v1142
    %1832 = vmatprep.subr.bf16.mxu0 %v1203
    %1833 = vmatpush2.bf16.msra.mxu0 %v1202
    %1834 = vmatprep.subr.bf16.mxu0 %v1199
    %1835 = vmatpush2.bf16.msra.mxu0 %v1198
    %1836 = vmatprep.subr.bf16.mxu0 %v1195
    %1837 = vmatpush2.bf16.msra.mxu0 %v1194
    %1838 = vmatprep.subr.bf16.mxu0 %v1191
    %1839 = vmatpush2.bf16.msra.mxu0 %v1190
    %1840 = vmatprep.subr.bf16.mxu0 %v1187
    %1841 = vmatpush2.bf16.msra.mxu0 %v1186
    %1842 = vmatprep.subr.bf16.mxu0 %v1183
    %1843 = vmatpush2.bf16.msra.mxu0 %v1182
    %1844 = vmatprep.subr.bf16.mxu0 %v1179
    %1845 = vmatpush2.bf16.msra.mxu0 %v1178
    %1846 = vmatprep.subr.bf16.mxu0 %v1175
    %1847 = vmatpush2.bf16.msra.mxu0 %v1174
    %1848 = vmatprep.mubr.bf16.mxu0 %v87
    %1849 = vmatmul.mubr.bf16.gmra.mxu0 %v86
    %v1850 = vpop.f32.mrf.mxu0
    %v1851 = vadd.f32 %v363, %v1850
    %v1852 = vpop.f32.mrf.mxu0
    %v1853 = vadd.f32 %v367, %v1852
    %v1854 = vpop.f32.mrf.mxu0
    %v1855 = vpop.f32.mrf.mxu0
    %1856 = vdwg.mxu0
    %1857 = vmatprep.subr.bf16.mxu0 %v1235
    %1858 = vmatpush1.bf16.msra.mxu0 %v1234
    %1859 = vmatprep.subr.bf16.mxu0 %v1231
    %1860 = vmatpush1.bf16.msra.mxu0 %v1230
    %1861 = vmatprep.subr.bf16.mxu0 %v1227
    %1862 = vmatpush1.bf16.msra.mxu0 %v1226
    %1863 = vmatprep.subr.bf16.mxu0 %v1223
    %1864 = vmatpush1.bf16.msra.mxu0 %v1222
    %1865 = vmatprep.subr.bf16.mxu0 %v1219
    %1866 = vmatpush1.bf16.msra.mxu0 %v1218
    %1867 = vmatprep.subr.bf16.mxu0 %v1215
    %1868 = vmatpush1.bf16.msra.mxu0 %v1214
    %1869 = vmatprep.subr.bf16.mxu0 %v1211
    %1870 = vmatpush1.bf16.msra.mxu0 %v1210
    %1871 = vmatprep.subr.bf16.mxu0 %v1207
    %1872 = vmatpush1.bf16.msra.mxu0 %v1206
    %1873 = vmatprep.subr.bf16.mxu0 %v1267
    %1874 = vmatpush2.bf16.msra.mxu0 %v1266
    %1875 = vmatprep.subr.bf16.mxu0 %v1263
    %1876 = vmatpush2.bf16.msra.mxu0 %v1262
    %1877 = vmatprep.subr.bf16.mxu0 %v1259
    %1878 = vmatpush2.bf16.msra.mxu0 %v1258
    %1879 = vmatprep.subr.bf16.mxu0 %v1255
    %1880 = vmatpush2.bf16.msra.mxu0 %v1254
    %1881 = vmatprep.subr.bf16.mxu0 %v1251
    %1882 = vmatpush2.bf16.msra.mxu0 %v1250
    %1883 = vmatprep.subr.bf16.mxu0 %v1247
    %1884 = vmatpush2.bf16.msra.mxu0 %v1246
    %1885 = vmatprep.subr.bf16.mxu0 %v1243
    %1886 = vmatpush2.bf16.msra.mxu0 %v1242
    %1887 = vmatprep.subr.bf16.mxu0 %v1239
    %1888 = vmatpush2.bf16.msra.mxu0 %v1238
    %1889 = vmatprep.mubr.bf16.mxu0 %v89
    %1890 = vmatmul.mubr.bf16.gmra.mxu0 %v88
    %v1891 = vpop.f32.mrf.mxu0
    %v1892 = vadd.f32 %v1851, %v1891
    %v1893 = vpop.f32.mrf.mxu0
    %v1894 = vadd.f32 %v1853, %v1893
    %v1895 = vpop.f32.mrf.mxu0
    %v1896 = vpop.f32.mrf.mxu0
    %1897 = vdwg.mxu0
    %1898 = vmatprep.subr.bf16.mxu0 %v1299
    %1899 = vmatpush1.bf16.msra.mxu0 %v1298
    %1900 = vmatprep.subr.bf16.mxu0 %v1295
    %1901 = vmatpush1.bf16.msra.mxu0 %v1294
    %1902 = vmatprep.subr.bf16.mxu0 %v1291
    %1903 = vmatpush1.bf16.msra.mxu0 %v1290
    %1904 = vmatprep.subr.bf16.mxu0 %v1287
    %1905 = vmatpush1.bf16.msra.mxu0 %v1286
    %1906 = vmatprep.subr.bf16.mxu0 %v1283
    %1907 = vmatpush1.bf16.msra.mxu0 %v1282
    %1908 = vmatprep.subr.bf16.mxu0 %v1279
    %1909 = vmatpush1.bf16.msra.mxu0 %v1278
    %1910 = vmatprep.subr.bf16.mxu0 %v1275
    %1911 = vmatpush1.bf16.msra.mxu0 %v1274
    %1912 = vmatprep.subr.bf16.mxu0 %v1271
    %1913 = vmatpush1.bf16.msra.mxu0 %v1270
    %1914 = vmatprep.subr.bf16.mxu0 %v1331
    %1915 = vmatpush2.bf16.msra.mxu0 %v1330
    %1916 = vmatprep.subr.bf16.mxu0 %v1327
    %1917 = vmatpush2.bf16.msra.mxu0 %v1326
    %1918 = vmatprep.subr.bf16.mxu0 %v1323
    %1919 = vmatpush2.bf16.msra.mxu0 %v1322
    %1920 = vmatprep.subr.bf16.mxu0 %v1319
    %1921 = vmatpush2.bf16.msra.mxu0 %v1318
    %1922 = vmatprep.subr.bf16.mxu0 %v1315
    %1923 = vmatpush2.bf16.msra.mxu0 %v1314
    %1924 = vmatprep.subr.bf16.mxu0 %v1311
    %1925 = vmatpush2.bf16.msra.mxu0 %v1310
    %1926 = vmatprep.subr.bf16.mxu0 %v1307
    %1927 = vmatpush2.bf16.msra.mxu0 %v1306
    %1928 = vmatprep.subr.bf16.mxu0 %v1303
    %1929 = vmatpush2.bf16.msra.mxu0 %v1302
    %1930 = vmatprep.mubr.bf16.mxu0 %v91
    %1931 = vmatmul.mubr.bf16.gmra.mxu0 %v90
    %v1932 = vpop.f32.mrf.mxu0
    %v1933 = vadd.f32 %v1892, %v1932
    %v1934 = vpop.f32.mrf.mxu0
    %v1935 = vadd.f32 %v1894, %v1934
    %v1936 = vpop.f32.mrf.mxu0
    %v1937 = vpop.f32.mrf.mxu0
    %1938 = vdwg.mxu0
    %1939 = vmatprep.subr.bf16.mxu0 %v1363
    %1940 = vmatpush1.bf16.msra.mxu0 %v1362
    %1941 = vmatprep.subr.bf16.mxu0 %v1359
    %1942 = vmatpush1.bf16.msra.mxu0 %v1358
    %1943 = vmatprep.subr.bf16.mxu0 %v1355
    %1944 = vmatpush1.bf16.msra.mxu0 %v1354
    %1945 = vmatprep.subr.bf16.mxu0 %v1351
    %1946 = vmatpush1.bf16.msra.mxu0 %v1350
    %1947 = vmatprep.subr.bf16.mxu0 %v1347
    %1948 = vmatpush1.bf16.msra.mxu0 %v1346
    %1949 = vmatprep.subr.bf16.mxu0 %v1343
    %1950 = vmatpush1.bf16.msra.mxu0 %v1342
    %1951 = vmatprep.subr.bf16.mxu0 %v1339
    %1952 = vmatpush1.bf16.msra.mxu0 %v1338
    %1953 = vmatprep.subr.bf16.mxu0 %v1335
    %1954 = vmatpush1.bf16.msra.mxu0 %v1334
    %1955 = vmatprep.subr.bf16.mxu0 %v1395
    %1956 = vmatpush2.bf16.msra.mxu0 %v1394
    %1957 = vmatprep.subr.bf16.mxu0 %v1391
    %1958 = vmatpush2.bf16.msra.mxu0 %v1390
    %1959 = vmatprep.subr.bf16.mxu0 %v1387
    %1960 = vmatpush2.bf16.msra.mxu0 %v1386
    %1961 = vmatprep.subr.bf16.mxu0 %v1383
    %1962 = vmatpush2.bf16.msra.mxu0 %v1382
    %1963 = vmatprep.subr.bf16.mxu0 %v1379
    %1964 = vmatpush2.bf16.msra.mxu0 %v1378
    %1965 = vmatprep.subr.bf16.mxu0 %v1375
    %1966 = vmatpush2.bf16.msra.mxu0 %v1374
    %1967 = vmatprep.subr.bf16.mxu0 %v1371
    %1968 = vmatpush2.bf16.msra.mxu0 %v1370
    %1969 = vmatprep.subr.bf16.mxu0 %v1367
    %1970 = vmatpush2.bf16.msra.mxu0 %v1366
    %1971 = vmatprep.mubr.bf16.mxu0 %v93
    %1972 = vmatmul.mubr.bf16.gmra.mxu0 %v92
    %v1973 = vpop.f32.mrf.mxu0
    %v1974 = vadd.f32 %v1933, %v1973
    %v1975 = vpop.f32.mrf.mxu0
    %v1976 = vadd.f32 %v1935, %v1975
    %v1977 = vpop.f32.mrf.mxu0
    %v1978 = vpop.f32.mrf.mxu0
    %1979 = vdwg.mxu0
    %v1980 = vmul.f32 %v1810, 0.01
    %v1981 = vmul.f32 %v1812, 0.01
    %v1982 = vmul.f32 %v1974, 0.01
    %v1983 = vmul.f32 %v1976, 0.01
    %v1984 = vmax.f32 %v1810, %v1980
    %v1985 = vmax.f32 %v1812, %v1981
    %v1986 = vmax.f32 %v1974, %v1982
    %v1987 = vmax.f32 %v1976, %v1983
    %v1988 = vpack.c.bf16 %v1984, %v1984
    %v1989 = vpack.c.bf16 %v1985, %v1985
    %v1990 = vpack.c.bf16 %v1986, %v1986
    %v1991 = vpack.c.bf16 %v1987, %v1987
    %v1992 = vld [vmem:[#allocation5] sm:$0xff]
    %v1993 = vld [vmem:[#allocation5 + $0x8] sm:$0xff]
    %v1994 = vld [vmem:[#allocation5 + $0x10] sm:$0xff]
    %v1995 = vld [vmem:[#allocation5 + $0x18] sm:$0xff]
    %v1996 = vld [vmem:[#allocation5 + $0x20] sm:$0xff]
    %v1997 = vld [vmem:[#allocation5 + $0x28] sm:$0xff]
    %v1998 = vld [vmem:[#allocation5 + $0x30] sm:$0xff]
    %v1999 = vld [vmem:[#allocation5 + $0x38] sm:$0xff]
    %v2000 = vld [vmem:[#allocation5 + $0x40] sm:$0xff]
    %v2001 = vld [vmem:[#allocation5 + $0x48] sm:$0xff]
    %v2002 = vld [vmem:[#allocation5 + $0x50] sm:$0xff]
    %v2003 = vld [vmem:[#allocation5 + $0x58] sm:$0xff]
    %v2004 = vld [vmem:[#allocation5 + $0x60] sm:$0xff]
    %v2005 = vld [vmem:[#allocation5 + $0x68] sm:$0xff]
    %v2006 = vld [vmem:[#allocation5 + $0x70] sm:$0xff]
    %v2007 = vld [vmem:[#allocation5 + $0x78] sm:$0xff]
    %v2008 = vld [vmem:[#allocation5 + $0x80] sm:$0xff]
    %v2009 = vld [vmem:[#allocation5 + $0x88] sm:$0xff]
    %v2010 = vld [vmem:[#allocation5 + $0x90] sm:$0xff]
    %v2011 = vld [vmem:[#allocation5 + $0x98] sm:$0xff]
    %v2012 = vld [vmem:[#allocation5 + $0xa0] sm:$0xff]
    %v2013 = vld [vmem:[#allocation5 + $0xa8] sm:$0xff]
    %v2014 = vld [vmem:[#allocation5 + $0xb0] sm:$0xff]
    %v2015 = vld [vmem:[#allocation5 + $0xb8] sm:$0xff]
    %v2016 = vld [vmem:[#allocation5 + $0xc0] sm:$0xff]
    %v2017 = vld [vmem:[#allocation5 + $0xc8] sm:$0xff]
    %v2018 = vld [vmem:[#allocation5 + $0xd0] sm:$0xff]
    %v2019 = vld [vmem:[#allocation5 + $0xd8] sm:$0xff]
    %v2020 = vld [vmem:[#allocation5 + $0xe0] sm:$0xff]
    %v2021 = vld [vmem:[#allocation5 + $0xe8] sm:$0xff]
    %v2022 = vld [vmem:[#allocation5 + $0xf0] sm:$0xff]
    %v2023 = vld [vmem:[#allocation5 + $0xf8] sm:$0xff]
    %v2024 = vld [vmem:[#allocation5 + $0x100] sm:$0xff]
    %v2025 = vld [vmem:[#allocation5 + $0x108] sm:$0xff]
    %v2026 = vld [vmem:[#allocation5 + $0x110] sm:$0xff]
    %v2027 = vld [vmem:[#allocation5 + $0x118] sm:$0xff]
    %v2028 = vld [vmem:[#allocation5 + $0x120] sm:$0xff]
    %v2029 = vld [vmem:[#allocation5 + $0x128] sm:$0xff]
    %v2030 = vld [vmem:[#allocation5 + $0x130] sm:$0xff]
    %v2031 = vld [vmem:[#allocation5 + $0x138] sm:$0xff]
    %v2032 = vld [vmem:[#allocation5 + $0x140] sm:$0xff]
    %v2033 = vld [vmem:[#allocation5 + $0x148] sm:$0xff]
    %v2034 = vld [vmem:[#allocation5 + $0x150] sm:$0xff]
    %v2035 = vld [vmem:[#allocation5 + $0x158] sm:$0xff]
    %v2036 = vld [vmem:[#allocation5 + $0x160] sm:$0xff]
    %v2037 = vld [vmem:[#allocation5 + $0x168] sm:$0xff]
    %v2038 = vld [vmem:[#allocation5 + $0x170] sm:$0xff]
    %v2039 = vld [vmem:[#allocation5 + $0x178] sm:$0xff]
    %v2040 = vld [vmem:[#allocation5 + $0x180] sm:$0xff]
    %v2041 = vld [vmem:[#allocation5 + $0x188] sm:$0xff]
    %v2042 = vld [vmem:[#allocation5 + $0x190] sm:$0xff]
    %v2043 = vld [vmem:[#allocation5 + $0x198] sm:$0xff]
    %v2044 = vld [vmem:[#allocation5 + $0x1a0] sm:$0xff]
    %v2045 = vld [vmem:[#allocation5 + $0x1a8] sm:$0xff]
    %v2046 = vld [vmem:[#allocation5 + $0x1b0] sm:$0xff]
    %v2047 = vld [vmem:[#allocation5 + $0x1b8] sm:$0xff]
    %v2048 = vld [vmem:[#allocation5 + $0x1c0] sm:$0xff]
    %v2049 = vld [vmem:[#allocation5 + $0x1c8] sm:$0xff]
    %v2050 = vld [vmem:[#allocation5 + $0x1d0] sm:$0xff]
    %v2051 = vld [vmem:[#allocation5 + $0x1d8] sm:$0xff]
    %v2052 = vld [vmem:[#allocation5 + $0x1e0] sm:$0xff]
    %v2053 = vld [vmem:[#allocation5 + $0x1e8] sm:$0xff]
    %v2054 = vld [vmem:[#allocation5 + $0x1f0] sm:$0xff]
    %v2055 = vld [vmem:[#allocation5 + $0x1f8] sm:$0xff]
    %v2056 = vld [vmem:[#allocation5 + $0x200] sm:$0xff]
    %v2057 = vld [vmem:[#allocation5 + $0x208] sm:$0xff]
    %v2058 = vld [vmem:[#allocation5 + $0x210] sm:$0xff]
    %v2059 = vld [vmem:[#allocation5 + $0x218] sm:$0xff]
    %v2060 = vld [vmem:[#allocation5 + $0x220] sm:$0xff]
    %v2061 = vld [vmem:[#allocation5 + $0x228] sm:$0xff]
    %v2062 = vld [vmem:[#allocation5 + $0x230] sm:$0xff]
    %v2063 = vld [vmem:[#allocation5 + $0x238] sm:$0xff]
    %v2064 = vld [vmem:[#allocation5 + $0x240] sm:$0xff]
    %v2065 = vld [vmem:[#allocation5 + $0x248] sm:$0xff]
    %v2066 = vld [vmem:[#allocation5 + $0x250] sm:$0xff]
    %v2067 = vld [vmem:[#allocation5 + $0x258] sm:$0xff]
    %v2068 = vld [vmem:[#allocation5 + $0x260] sm:$0xff]
    %v2069 = vld [vmem:[#allocation5 + $0x268] sm:$0xff]
    %v2070 = vld [vmem:[#allocation5 + $0x270] sm:$0xff]
    %v2071 = vld [vmem:[#allocation5 + $0x278] sm:$0xff]
    %v2072 = vld [vmem:[#allocation5 + $0x280] sm:$0xff]
    %v2073 = vld [vmem:[#allocation5 + $0x288] sm:$0xff]
    %v2074 = vld [vmem:[#allocation5 + $0x290] sm:$0xff]
    %v2075 = vld [vmem:[#allocation5 + $0x298] sm:$0xff]
    %v2076 = vld [vmem:[#allocation5 + $0x2a0] sm:$0xff]
    %v2077 = vld [vmem:[#allocation5 + $0x2a8] sm:$0xff]
    %v2078 = vld [vmem:[#allocation5 + $0x2b0] sm:$0xff]
    %v2079 = vld [vmem:[#allocation5 + $0x2b8] sm:$0xff]
    %v2080 = vld [vmem:[#allocation5 + $0x2c0] sm:$0xff]
    %v2081 = vld [vmem:[#allocation5 + $0x2c8] sm:$0xff]
    %v2082 = vld [vmem:[#allocation5 + $0x2d0] sm:$0xff]
    %v2083 = vld [vmem:[#allocation5 + $0x2d8] sm:$0xff]
    %v2084 = vld [vmem:[#allocation5 + $0x2e0] sm:$0xff]
    %v2085 = vld [vmem:[#allocation5 + $0x2e8] sm:$0xff]
    %v2086 = vld [vmem:[#allocation5 + $0x2f0] sm:$0xff]
    %v2087 = vld [vmem:[#allocation5 + $0x2f8] sm:$0xff]
    %v2088 = vld [vmem:[#allocation5 + $0x300] sm:$0xff]
    %v2089 = vld [vmem:[#allocation5 + $0x308] sm:$0xff]
    %v2090 = vld [vmem:[#allocation5 + $0x310] sm:$0xff]
    %v2091 = vld [vmem:[#allocation5 + $0x318] sm:$0xff]
    %v2092 = vld [vmem:[#allocation5 + $0x320] sm:$0xff]
    %v2093 = vld [vmem:[#allocation5 + $0x328] sm:$0xff]
    %v2094 = vld [vmem:[#allocation5 + $0x330] sm:$0xff]
    %v2095 = vld [vmem:[#allocation5 + $0x338] sm:$0xff]
    %v2096 = vld [vmem:[#allocation5 + $0x340] sm:$0xff]
    %v2097 = vld [vmem:[#allocation5 + $0x348] sm:$0xff]
    %v2098 = vld [vmem:[#allocation5 + $0x350] sm:$0xff]
    %v2099 = vld [vmem:[#allocation5 + $0x358] sm:$0xff]
    %v2100 = vld [vmem:[#allocation5 + $0x360] sm:$0xff]
    %v2101 = vld [vmem:[#allocation5 + $0x368] sm:$0xff]
    %v2102 = vld [vmem:[#allocation5 + $0x370] sm:$0xff]
    %v2103 = vld [vmem:[#allocation5 + $0x378] sm:$0xff]
    %v2104 = vld [vmem:[#allocation5 + $0x380] sm:$0xff]
    %v2105 = vld [vmem:[#allocation5 + $0x388] sm:$0xff]
    %v2106 = vld [vmem:[#allocation5 + $0x390] sm:$0xff]
    %v2107 = vld [vmem:[#allocation5 + $0x398] sm:$0xff]
    %v2108 = vld [vmem:[#allocation5 + $0x3a0] sm:$0xff]
    %v2109 = vld [vmem:[#allocation5 + $0x3a8] sm:$0xff]
    %v2110 = vld [vmem:[#allocation5 + $0x3b0] sm:$0xff]
    %v2111 = vld [vmem:[#allocation5 + $0x3b8] sm:$0xff]
    %v2112 = vld [vmem:[#allocation5 + $0x3c0] sm:$0xff]
    %v2113 = vld [vmem:[#allocation5 + $0x3c8] sm:$0xff]
    %v2114 = vld [vmem:[#allocation5 + $0x3d0] sm:$0xff]
    %v2115 = vld [vmem:[#allocation5 + $0x3d8] sm:$0xff]
    %v2116 = vld [vmem:[#allocation5 + $0x3e0] sm:$0xff]
    %v2117 = vld [vmem:[#allocation5 + $0x3e8] sm:$0xff]
    %v2118 = vld [vmem:[#allocation5 + $0x3f0] sm:$0xff]
    %v2119 = vld [vmem:[#allocation5 + $0x3f8] sm:$0xff]
    %v2120 = vld [vmem:[%s5] sm:$0xf]
    %v2122 = vlaneseq
    %v2123 = vshrl.u32 %v2122, 7
    %v2124 = vsub.s32 0, %v2123
    %v2125 = vrot.slane %v2120, %v2124
    %v2126 = vlaneseq
    %v2127 = vshrl.u32 %v2126, 7
    %v2128 = vsub.s32 1, %v2127
    %v2129 = vrot.slane %v2120, %v2128
    %v2130 = vlaneseq
    %v2131 = vshrl.u32 %v2130, 7
    %v2132 = vsub.s32 2, %v2131
    %v2133 = vrot.slane %v2120, %v2132
    %v2134 = vlaneseq
    %v2135 = vshrl.u32 %v2134, 7
    %v2136 = vsub.s32 3, %v2135
    %v2137 = vrot.slane %v2120, %v2136
    %v2270 = vunpack.c.l.b16 %v1992
    %v2271 = vunpack.c.h.b16 %v1992
    %v2272 = vunpack.c.l.b16 %v1993
    %v2273 = vunpack.c.h.b16 %v1993
    %v2274 = vunpack.c.l.b16 %v1994
    %v2275 = vunpack.c.h.b16 %v1994
    %v2276 = vunpack.c.l.b16 %v1995
    %v2277 = vunpack.c.h.b16 %v1995
    %v2278 = vunpack.c.l.b16 %v1996
    %v2279 = vunpack.c.h.b16 %v1996
    %v2280 = vunpack.c.l.b16 %v1997
    %v2281 = vunpack.c.h.b16 %v1997
    %v2282 = vunpack.c.l.b16 %v1998
    %v2283 = vunpack.c.h.b16 %v1998
    %v2284 = vunpack.c.l.b16 %v1999
    %v2285 = vunpack.c.h.b16 %v1999
    %v2286 = vunpack.c.l.b16 %v2000
    %v2287 = vunpack.c.h.b16 %v2000
    %v2288 = vunpack.c.l.b16 %v2001
    %v2289 = vunpack.c.h.b16 %v2001
    %v2290 = vunpack.c.l.b16 %v2002
    %v2291 = vunpack.c.h.b16 %v2002
    %v2292 = vunpack.c.l.b16 %v2003
    %v2293 = vunpack.c.h.b16 %v2003
    %v2294 = vunpack.c.l.b16 %v2004
    %v2295 = vunpack.c.h.b16 %v2004
    %v2296 = vunpack.c.l.b16 %v2005
    %v2297 = vunpack.c.h.b16 %v2005
    %v2298 = vunpack.c.l.b16 %v2006
    %v2299 = vunpack.c.h.b16 %v2006
    %v2300 = vunpack.c.l.b16 %v2007
    %v2301 = vunpack.c.h.b16 %v2007
    %v2302 = vunpack.c.l.b16 %v2008
    %v2303 = vunpack.c.h.b16 %v2008
    %v2304 = vunpack.c.l.b16 %v2009
    %v2305 = vunpack.c.h.b16 %v2009
    %v2306 = vunpack.c.l.b16 %v2010
    %v2307 = vunpack.c.h.b16 %v2010
    %v2308 = vunpack.c.l.b16 %v2011
    %v2309 = vunpack.c.h.b16 %v2011
    %v2310 = vunpack.c.l.b16 %v2012
    %v2311 = vunpack.c.h.b16 %v2012
    %v2312 = vunpack.c.l.b16 %v2013
    %v2313 = vunpack.c.h.b16 %v2013
    %v2314 = vunpack.c.l.b16 %v2014
    %v2315 = vunpack.c.h.b16 %v2014
    %v2316 = vunpack.c.l.b16 %v2015
    %v2317 = vunpack.c.h.b16 %v2015
    %v2318 = vunpack.c.l.b16 %v2016
    %v2319 = vunpack.c.h.b16 %v2016
    %v2320 = vunpack.c.l.b16 %v2017
    %v2321 = vunpack.c.h.b16 %v2017
    %v2322 = vunpack.c.l.b16 %v2018
    %v2323 = vunpack.c.h.b16 %v2018
    %v2324 = vunpack.c.l.b16 %v2019
    %v2325 = vunpack.c.h.b16 %v2019
    %v2326 = vunpack.c.l.b16 %v2020
    %v2327 = vunpack.c.h.b16 %v2020
    %v2328 = vunpack.c.l.b16 %v2021
    %v2329 = vunpack.c.h.b16 %v2021
    %v2330 = vunpack.c.l.b16 %v2022
    %v2331 = vunpack.c.h.b16 %v2022
    %v2332 = vunpack.c.l.b16 %v2023
    %v2333 = vunpack.c.h.b16 %v2023
    %v2334 = vunpack.c.l.b16 %v2024
    %v2335 = vunpack.c.h.b16 %v2024
    %v2336 = vunpack.c.l.b16 %v2025
    %v2337 = vunpack.c.h.b16 %v2025
    %v2338 = vunpack.c.l.b16 %v2026
    %v2339 = vunpack.c.h.b16 %v2026
    %v2340 = vunpack.c.l.b16 %v2027
    %v2341 = vunpack.c.h.b16 %v2027
    %v2342 = vunpack.c.l.b16 %v2028
    %v2343 = vunpack.c.h.b16 %v2028
    %v2344 = vunpack.c.l.b16 %v2029
    %v2345 = vunpack.c.h.b16 %v2029
    %v2346 = vunpack.c.l.b16 %v2030
    %v2347 = vunpack.c.h.b16 %v2030
    %v2348 = vunpack.c.l.b16 %v2031
    %v2349 = vunpack.c.h.b16 %v2031
    %v2350 = vunpack.c.l.b16 %v2032
    %v2351 = vunpack.c.h.b16 %v2032
    %v2352 = vunpack.c.l.b16 %v2033
    %v2353 = vunpack.c.h.b16 %v2033
    %v2354 = vunpack.c.l.b16 %v2034
    %v2355 = vunpack.c.h.b16 %v2034
    %v2356 = vunpack.c.l.b16 %v2035
    %v2357 = vunpack.c.h.b16 %v2035
    %v2358 = vunpack.c.l.b16 %v2036
    %v2359 = vunpack.c.h.b16 %v2036
    %v2360 = vunpack.c.l.b16 %v2037
    %v2361 = vunpack.c.h.b16 %v2037
    %v2362 = vunpack.c.l.b16 %v2038
    %v2363 = vunpack.c.h.b16 %v2038
    %v2364 = vunpack.c.l.b16 %v2039
    %v2365 = vunpack.c.h.b16 %v2039
    %v2366 = vunpack.c.l.b16 %v2040
    %v2367 = vunpack.c.h.b16 %v2040
    %v2368 = vunpack.c.l.b16 %v2041
    %v2369 = vunpack.c.h.b16 %v2041
    %v2370 = vunpack.c.l.b16 %v2042
    %v2371 = vunpack.c.h.b16 %v2042
    %v2372 = vunpack.c.l.b16 %v2043
    %v2373 = vunpack.c.h.b16 %v2043
    %v2374 = vunpack.c.l.b16 %v2044
    %v2375 = vunpack.c.h.b16 %v2044
    %v2376 = vunpack.c.l.b16 %v2045
    %v2377 = vunpack.c.h.b16 %v2045
    %v2378 = vunpack.c.l.b16 %v2046
    %v2379 = vunpack.c.h.b16 %v2046
    %v2380 = vunpack.c.l.b16 %v2047
    %v2381 = vunpack.c.h.b16 %v2047
    %v2382 = vunpack.c.l.b16 %v2048
    %v2383 = vunpack.c.h.b16 %v2048
    %v2384 = vunpack.c.l.b16 %v2049
    %v2385 = vunpack.c.h.b16 %v2049
    %v2386 = vunpack.c.l.b16 %v2050
    %v2387 = vunpack.c.h.b16 %v2050
    %v2388 = vunpack.c.l.b16 %v2051
    %v2389 = vunpack.c.h.b16 %v2051
    %v2390 = vunpack.c.l.b16 %v2052
    %v2391 = vunpack.c.h.b16 %v2052
    %v2392 = vunpack.c.l.b16 %v2053
    %v2393 = vunpack.c.h.b16 %v2053
    %v2394 = vunpack.c.l.b16 %v2054
    %v2395 = vunpack.c.h.b16 %v2054
    %v2396 = vunpack.c.l.b16 %v2055
    %v2397 = vunpack.c.h.b16 %v2055
    %v2398 = vunpack.c.l.b16 %v2056
    %v2399 = vunpack.c.h.b16 %v2056
    %v2400 = vunpack.c.l.b16 %v2057
    %v2401 = vunpack.c.h.b16 %v2057
    %v2402 = vunpack.c.l.b16 %v2058
    %v2403 = vunpack.c.h.b16 %v2058
    %v2404 = vunpack.c.l.b16 %v2059
    %v2405 = vunpack.c.h.b16 %v2059
    %v2406 = vunpack.c.l.b16 %v2060
    %v2407 = vunpack.c.h.b16 %v2060
    %v2408 = vunpack.c.l.b16 %v2061
    %v2409 = vunpack.c.h.b16 %v2061
    %v2410 = vunpack.c.l.b16 %v2062
    %v2411 = vunpack.c.h.b16 %v2062
    %v2412 = vunpack.c.l.b16 %v2063
    %v2413 = vunpack.c.h.b16 %v2063
    %v2414 = vunpack.c.l.b16 %v2064
    %v2415 = vunpack.c.h.b16 %v2064
    %v2416 = vunpack.c.l.b16 %v2065
    %v2417 = vunpack.c.h.b16 %v2065
    %v2418 = vunpack.c.l.b16 %v2066
    %v2419 = vunpack.c.h.b16 %v2066
    %v2420 = vunpack.c.l.b16 %v2067
    %v2421 = vunpack.c.h.b16 %v2067
    %v2422 = vunpack.c.l.b16 %v2068
    %v2423 = vunpack.c.h.b16 %v2068
    %v2424 = vunpack.c.l.b16 %v2069
    %v2425 = vunpack.c.h.b16 %v2069
    %v2426 = vunpack.c.l.b16 %v2070
    %v2427 = vunpack.c.h.b16 %v2070
    %v2428 = vunpack.c.l.b16 %v2071
    %v2429 = vunpack.c.h.b16 %v2071
    %v2430 = vunpack.c.l.b16 %v2072
    %v2431 = vunpack.c.h.b16 %v2072
    %v2432 = vunpack.c.l.b16 %v2073
    %v2433 = vunpack.c.h.b16 %v2073
    %v2434 = vunpack.c.l.b16 %v2074
    %v2435 = vunpack.c.h.b16 %v2074
    %v2436 = vunpack.c.l.b16 %v2075
    %v2437 = vunpack.c.h.b16 %v2075
    %v2438 = vunpack.c.l.b16 %v2076
    %v2439 = vunpack.c.h.b16 %v2076
    %v2440 = vunpack.c.l.b16 %v2077
    %v2441 = vunpack.c.h.b16 %v2077
    %v2442 = vunpack.c.l.b16 %v2078
    %v2443 = vunpack.c.h.b16 %v2078
    %v2444 = vunpack.c.l.b16 %v2079
    %v2445 = vunpack.c.h.b16 %v2079
    %v2446 = vunpack.c.l.b16 %v2080
    %v2447 = vunpack.c.h.b16 %v2080
    %v2448 = vunpack.c.l.b16 %v2081
    %v2449 = vunpack.c.h.b16 %v2081
    %v2450 = vunpack.c.l.b16 %v2082
    %v2451 = vunpack.c.h.b16 %v2082
    %v2452 = vunpack.c.l.b16 %v2083
    %v2453 = vunpack.c.h.b16 %v2083
    %v2454 = vunpack.c.l.b16 %v2084
    %v2455 = vunpack.c.h.b16 %v2084
    %v2456 = vunpack.c.l.b16 %v2085
    %v2457 = vunpack.c.h.b16 %v2085
    %v2458 = vunpack.c.l.b16 %v2086
    %v2459 = vunpack.c.h.b16 %v2086
    %v2460 = vunpack.c.l.b16 %v2087
    %v2461 = vunpack.c.h.b16 %v2087
    %v2462 = vunpack.c.l.b16 %v2088
    %v2463 = vunpack.c.h.b16 %v2088
    %v2464 = vunpack.c.l.b16 %v2089
    %v2465 = vunpack.c.h.b16 %v2089
    %v2466 = vunpack.c.l.b16 %v2090
    %v2467 = vunpack.c.h.b16 %v2090
    %v2468 = vunpack.c.l.b16 %v2091
    %v2469 = vunpack.c.h.b16 %v2091
    %v2470 = vunpack.c.l.b16 %v2092
    %v2471 = vunpack.c.h.b16 %v2092
    %v2472 = vunpack.c.l.b16 %v2093
    %v2473 = vunpack.c.h.b16 %v2093
    %v2474 = vunpack.c.l.b16 %v2094
    %v2475 = vunpack.c.h.b16 %v2094
    %v2476 = vunpack.c.l.b16 %v2095
    %v2477 = vunpack.c.h.b16 %v2095
    %v2478 = vunpack.c.l.b16 %v2096
    %v2479 = vunpack.c.h.b16 %v2096
    %v2480 = vunpack.c.l.b16 %v2097
    %v2481 = vunpack.c.h.b16 %v2097
    %v2482 = vunpack.c.l.b16 %v2098
    %v2483 = vunpack.c.h.b16 %v2098
    %v2484 = vunpack.c.l.b16 %v2099
    %v2485 = vunpack.c.h.b16 %v2099
    %v2486 = vunpack.c.l.b16 %v2100
    %v2487 = vunpack.c.h.b16 %v2100
    %v2488 = vunpack.c.l.b16 %v2101
    %v2489 = vunpack.c.h.b16 %v2101
    %v2490 = vunpack.c.l.b16 %v2102
    %v2491 = vunpack.c.h.b16 %v2102
    %v2492 = vunpack.c.l.b16 %v2103
    %v2493 = vunpack.c.h.b16 %v2103
    %v2494 = vunpack.c.l.b16 %v2104
    %v2495 = vunpack.c.h.b16 %v2104
    %v2496 = vunpack.c.l.b16 %v2105
    %v2497 = vunpack.c.h.b16 %v2105
    %v2498 = vunpack.c.l.b16 %v2106
    %v2499 = vunpack.c.h.b16 %v2106
    %v2500 = vunpack.c.l.b16 %v2107
    %v2501 = vunpack.c.h.b16 %v2107
    %v2502 = vunpack.c.l.b16 %v2108
    %v2503 = vunpack.c.h.b16 %v2108
    %v2504 = vunpack.c.l.b16 %v2109
    %v2505 = vunpack.c.h.b16 %v2109
    %v2506 = vunpack.c.l.b16 %v2110
    %v2507 = vunpack.c.h.b16 %v2110
    %v2508 = vunpack.c.l.b16 %v2111
    %v2509 = vunpack.c.h.b16 %v2111
    %v2510 = vunpack.c.l.b16 %v2112
    %v2511 = vunpack.c.h.b16 %v2112
    %v2512 = vunpack.c.l.b16 %v2113
    %v2513 = vunpack.c.h.b16 %v2113
    %v2514 = vunpack.c.l.b16 %v2114
    %v2515 = vunpack.c.h.b16 %v2114
    %v2516 = vunpack.c.l.b16 %v2115
    %v2517 = vunpack.c.h.b16 %v2115
    %v2518 = vunpack.c.l.b16 %v2116
    %v2519 = vunpack.c.h.b16 %v2116
    %v2520 = vunpack.c.l.b16 %v2117
    %v2521 = vunpack.c.h.b16 %v2117
    %v2522 = vunpack.c.l.b16 %v2118
    %v2523 = vunpack.c.h.b16 %v2118
    %v2524 = vunpack.c.l.b16 %v2119
    %v2525 = vunpack.c.h.b16 %v2119
    %v2526 = vpack.c.b16 %v2274, %v2270
    %v2527 = vpack.c.b16 %v2275, %v2271
    %v2528 = vpack.c.b16 %v2276, %v2272
    %v2529 = vpack.c.b16 %v2277, %v2273
    %v2530 = vpack.c.b16 %v2282, %v2278
    %v2531 = vpack.c.b16 %v2283, %v2279
    %v2532 = vpack.c.b16 %v2284, %v2280
    %v2533 = vpack.c.b16 %v2285, %v2281
    %v2534 = vpack.c.b16 %v2290, %v2286
    %v2535 = vpack.c.b16 %v2291, %v2287
    %v2536 = vpack.c.b16 %v2292, %v2288
    %v2537 = vpack.c.b16 %v2293, %v2289
    %v2538 = vpack.c.b16 %v2298, %v2294
    %v2539 = vpack.c.b16 %v2299, %v2295
    %v2540 = vpack.c.b16 %v2300, %v2296
    %v2541 = vpack.c.b16 %v2301, %v2297
    %v2542 = vpack.c.b16 %v2306, %v2302
    %v2543 = vpack.c.b16 %v2307, %v2303
    %v2544 = vpack.c.b16 %v2308, %v2304
    %v2545 = vpack.c.b16 %v2309, %v2305
    %v2546 = vpack.c.b16 %v2314, %v2310
    %v2547 = vpack.c.b16 %v2315, %v2311
    %v2548 = vpack.c.b16 %v2316, %v2312
    %v2549 = vpack.c.b16 %v2317, %v2313
    %v2550 = vpack.c.b16 %v2322, %v2318
    %v2551 = vpack.c.b16 %v2323, %v2319
    %v2552 = vpack.c.b16 %v2324, %v2320
    %v2553 = vpack.c.b16 %v2325, %v2321
    %v2554 = vpack.c.b16 %v2330, %v2326
    %v2555 = vpack.c.b16 %v2331, %v2327
    %v2556 = vpack.c.b16 %v2332, %v2328
    %v2557 = vpack.c.b16 %v2333, %v2329
    %v2558 = vpack.c.b16 %v2338, %v2334
    %v2559 = vpack.c.b16 %v2339, %v2335
    %v2560 = vpack.c.b16 %v2340, %v2336
    %v2561 = vpack.c.b16 %v2341, %v2337
    %v2562 = vpack.c.b16 %v2346, %v2342
    %v2563 = vpack.c.b16 %v2347, %v2343
    %v2564 = vpack.c.b16 %v2348, %v2344
    %v2565 = vpack.c.b16 %v2349, %v2345
    %v2566 = vpack.c.b16 %v2354, %v2350
    %v2567 = vpack.c.b16 %v2355, %v2351
    %v2568 = vpack.c.b16 %v2356, %v2352
    %v2569 = vpack.c.b16 %v2357, %v2353
    %v2570 = vpack.c.b16 %v2362, %v2358
    %v2571 = vpack.c.b16 %v2363, %v2359
    %v2572 = vpack.c.b16 %v2364, %v2360
    %v2573 = vpack.c.b16 %v2365, %v2361
    %v2574 = vpack.c.b16 %v2370, %v2366
    %v2575 = vpack.c.b16 %v2371, %v2367
    %v2576 = vpack.c.b16 %v2372, %v2368
    %v2577 = vpack.c.b16 %v2373, %v2369
    %v2578 = vpack.c.b16 %v2378, %v2374
    %v2579 = vpack.c.b16 %v2379, %v2375
    %v2580 = vpack.c.b16 %v2380, %v2376
    %v2581 = vpack.c.b16 %v2381, %v2377
    %v2582 = vpack.c.b16 %v2386, %v2382
    %v2583 = vpack.c.b16 %v2387, %v2383
    %v2584 = vpack.c.b16 %v2388, %v2384
    %v2585 = vpack.c.b16 %v2389, %v2385
    %v2586 = vpack.c.b16 %v2394, %v2390
    %v2587 = vpack.c.b16 %v2395, %v2391
    %v2588 = vpack.c.b16 %v2396, %v2392
    %v2589 = vpack.c.b16 %v2397, %v2393
    %v2590 = vpack.c.b16 %v2402, %v2398
    %v2591 = vpack.c.b16 %v2403, %v2399
    %v2592 = vpack.c.b16 %v2404, %v2400
    %v2593 = vpack.c.b16 %v2405, %v2401
    %v2594 = vpack.c.b16 %v2410, %v2406
    %v2595 = vpack.c.b16 %v2411, %v2407
    %v2596 = vpack.c.b16 %v2412, %v2408
    %v2597 = vpack.c.b16 %v2413, %v2409
    %v2598 = vpack.c.b16 %v2418, %v2414
    %v2599 = vpack.c.b16 %v2419, %v2415
    %v2600 = vpack.c.b16 %v2420, %v2416
    %v2601 = vpack.c.b16 %v2421, %v2417
    %v2602 = vpack.c.b16 %v2426, %v2422
    %v2603 = vpack.c.b16 %v2427, %v2423
    %v2604 = vpack.c.b16 %v2428, %v2424
    %v2605 = vpack.c.b16 %v2429, %v2425
    %v2606 = vpack.c.b16 %v2434, %v2430
    %v2607 = vpack.c.b16 %v2435, %v2431
    %v2608 = vpack.c.b16 %v2436, %v2432
    %v2609 = vpack.c.b16 %v2437, %v2433
    %v2610 = vpack.c.b16 %v2442, %v2438
    %v2611 = vpack.c.b16 %v2443, %v2439
    %v2612 = vpack.c.b16 %v2444, %v2440
    %v2613 = vpack.c.b16 %v2445, %v2441
    %v2614 = vpack.c.b16 %v2450, %v2446
    %v2615 = vpack.c.b16 %v2451, %v2447
    %v2616 = vpack.c.b16 %v2452, %v2448
    %v2617 = vpack.c.b16 %v2453, %v2449
    %v2618 = vpack.c.b16 %v2458, %v2454
    %v2619 = vpack.c.b16 %v2459, %v2455
    %v2620 = vpack.c.b16 %v2460, %v2456
    %v2621 = vpack.c.b16 %v2461, %v2457
    %v2622 = vpack.c.b16 %v2466, %v2462
    %v2623 = vpack.c.b16 %v2467, %v2463
    %v2624 = vpack.c.b16 %v2468, %v2464
    %v2625 = vpack.c.b16 %v2469, %v2465
    %v2626 = vpack.c.b16 %v2474, %v2470
    %v2627 = vpack.c.b16 %v2475, %v2471
    %v2628 = vpack.c.b16 %v2476, %v2472
    %v2629 = vpack.c.b16 %v2477, %v2473
    %v2630 = vpack.c.b16 %v2482, %v2478
    %v2631 = vpack.c.b16 %v2483, %v2479
    %v2632 = vpack.c.b16 %v2484, %v2480
    %v2633 = vpack.c.b16 %v2485, %v2481
    %v2634 = vpack.c.b16 %v2490, %v2486
    %v2635 = vpack.c.b16 %v2491, %v2487
    %v2636 = vpack.c.b16 %v2492, %v2488
    %v2637 = vpack.c.b16 %v2493, %v2489
    %v2638 = vpack.c.b16 %v2498, %v2494
    %v2639 = vpack.c.b16 %v2499, %v2495
    %v2640 = vpack.c.b16 %v2500, %v2496
    %v2641 = vpack.c.b16 %v2501, %v2497
    %v2642 = vpack.c.b16 %v2506, %v2502
    %v2643 = vpack.c.b16 %v2507, %v2503
    %v2644 = vpack.c.b16 %v2508, %v2504
    %v2645 = vpack.c.b16 %v2509, %v2505
    %v2646 = vpack.c.b16 %v2514, %v2510
    %v2647 = vpack.c.b16 %v2515, %v2511
    %v2648 = vpack.c.b16 %v2516, %v2512
    %v2649 = vpack.c.b16 %v2517, %v2513
    %v2650 = vpack.c.b16 %v2522, %v2518
    %v2651 = vpack.c.b16 %v2523, %v2519
    %v2652 = vpack.c.b16 %v2524, %v2520
    %v2653 = vpack.c.b16 %v2525, %v2521
    %2782 = vmatprep.subr.bf16.mxu0 %v2555
    %2783 = vmatpush1.bf16.msra.mxu0 %v2554
    %2784 = vmatprep.subr.bf16.mxu0 %v2551
    %2785 = vmatpush1.bf16.msra.mxu0 %v2550
    %2786 = vmatprep.subr.bf16.mxu0 %v2547
    %2787 = vmatpush1.bf16.msra.mxu0 %v2546
    %2788 = vmatprep.subr.bf16.mxu0 %v2543
    %2789 = vmatpush1.bf16.msra.mxu0 %v2542
    %2790 = vmatprep.subr.bf16.mxu0 %v2539
    %2791 = vmatpush1.bf16.msra.mxu0 %v2538
    %2792 = vmatprep.subr.bf16.mxu0 %v2535
    %2793 = vmatpush1.bf16.msra.mxu0 %v2534
    %2794 = vmatprep.subr.bf16.mxu0 %v2531
    %2795 = vmatpush1.bf16.msra.mxu0 %v2530
    %2796 = vmatprep.subr.bf16.mxu0 %v2527
    %2797 = vmatpush1.bf16.msra.mxu0 %v2526
    %2798 = vmatprep.subr.bf16.mxu0 %v2587
    %2799 = vmatpush2.bf16.msra.mxu0 %v2586
    %2800 = vmatprep.subr.bf16.mxu0 %v2583
    %2801 = vmatpush2.bf16.msra.mxu0 %v2582
    %2802 = vmatprep.subr.bf16.mxu0 %v2579
    %2803 = vmatpush2.bf16.msra.mxu0 %v2578
    %2804 = vmatprep.subr.bf16.mxu0 %v2575
    %2805 = vmatpush2.bf16.msra.mxu0 %v2574
    %2806 = vmatprep.subr.bf16.mxu0 %v2571
    %2807 = vmatpush2.bf16.msra.mxu0 %v2570
    %2808 = vmatprep.subr.bf16.mxu0 %v2567
    %2809 = vmatpush2.bf16.msra.mxu0 %v2566
    %2810 = vmatprep.subr.bf16.mxu0 %v2563
    %2811 = vmatpush2.bf16.msra.mxu0 %v2562
    %2812 = vmatprep.subr.bf16.mxu0 %v2559
    %2813 = vmatpush2.bf16.msra.mxu0 %v2558
    %2814 = vmatprep.mubr.bf16.mxu0 %v1989
    %2815 = vmatmul.mubr.bf16.gmra.mxu0 %v1988
    %v2816 = vpop.f32.mrf.mxu0
    %v2817 = vadd.f32 %v2125, %v2816
    %v2818 = vpop.f32.mrf.mxu0
    %v2819 = vadd.f32 %v2129, %v2818
    %v2820 = vpop.f32.mrf.mxu0
    %v2821 = vpop.f32.mrf.mxu0
    %2822 = vdwg.mxu0
    %2823 = vmatprep.subr.bf16.mxu0 %v2619
    %2824 = vmatpush1.bf16.msra.mxu0 %v2618
    %2825 = vmatprep.subr.bf16.mxu0 %v2615
    %2826 = vmatpush1.bf16.msra.mxu0 %v2614
    %2827 = vmatprep.subr.bf16.mxu0 %v2611
    %2828 = vmatpush1.bf16.msra.mxu0 %v2610
    %2829 = vmatprep.subr.bf16.mxu0 %v2607
    %2830 = vmatpush1.bf16.msra.mxu0 %v2606
    %2831 = vmatprep.subr.bf16.mxu0 %v2603
    %2832 = vmatpush1.bf16.msra.mxu0 %v2602
    %2833 = vmatprep.subr.bf16.mxu0 %v2599
    %2834 = vmatpush1.bf16.msra.mxu0 %v2598
    %2835 = vmatprep.subr.bf16.mxu0 %v2595
    %2836 = vmatpush1.bf16.msra.mxu0 %v2594
    %2837 = vmatprep.subr.bf16.mxu0 %v2591
    %2838 = vmatpush1.bf16.msra.mxu0 %v2590
    %2839 = vmatprep.subr.bf16.mxu0 %v2651
    %2840 = vmatpush2.bf16.msra.mxu0 %v2650
    %2841 = vmatprep.subr.bf16.mxu0 %v2647
    %2842 = vmatpush2.bf16.msra.mxu0 %v2646
    %2843 = vmatprep.subr.bf16.mxu0 %v2643
    %2844 = vmatpush2.bf16.msra.mxu0 %v2642
    %2845 = vmatprep.subr.bf16.mxu0 %v2639
    %2846 = vmatpush2.bf16.msra.mxu0 %v2638
    %2847 = vmatprep.subr.bf16.mxu0 %v2635
    %2848 = vmatpush2.bf16.msra.mxu0 %v2634
    %2849 = vmatprep.subr.bf16.mxu0 %v2631
    %2850 = vmatpush2.bf16.msra.mxu0 %v2630
    %2851 = vmatprep.subr.bf16.mxu0 %v2627
    %2852 = vmatpush2.bf16.msra.mxu0 %v2626
    %2853 = vmatprep.subr.bf16.mxu0 %v2623
    %2854 = vmatpush2.bf16.msra.mxu0 %v2622
    %2855 = vmatprep.mubr.bf16.mxu0 %v1991
    %2856 = vmatmul.mubr.bf16.gmra.mxu0 %v1990
    %v2857 = vpop.f32.mrf.mxu0
    %v2858 = vadd.f32 %v2817, %v2857
    %v2859 = vpop.f32.mrf.mxu0
    %v2860 = vadd.f32 %v2819, %v2859
    %v2861 = vpop.f32.mrf.mxu0
    %v2862 = vpop.f32.mrf.mxu0
    %2863 = vdwg.mxu0
    %2864 = vmatprep.subr.bf16.mxu0 %v2557
    %2865 = vmatpush1.bf16.msra.mxu0 %v2556
    %2866 = vmatprep.subr.bf16.mxu0 %v2553
    %2867 = vmatpush1.bf16.msra.mxu0 %v2552
    %2868 = vmatprep.subr.bf16.mxu0 %v2549
    %2869 = vmatpush1.bf16.msra.mxu0 %v2548
    %2870 = vmatprep.subr.bf16.mxu0 %v2545
    %2871 = vmatpush1.bf16.msra.mxu0 %v2544
    %2872 = vmatprep.subr.bf16.mxu0 %v2541
    %2873 = vmatpush1.bf16.msra.mxu0 %v2540
    %2874 = vmatprep.subr.bf16.mxu0 %v2537
    %2875 = vmatpush1.bf16.msra.mxu0 %v2536
    %2876 = vmatprep.subr.bf16.mxu0 %v2533
    %2877 = vmatpush1.bf16.msra.mxu0 %v2532
    %2878 = vmatprep.subr.bf16.mxu0 %v2529
    %2879 = vmatpush1.bf16.msra.mxu0 %v2528
    %2880 = vmatprep.subr.bf16.mxu0 %v2589
    %2881 = vmatpush2.bf16.msra.mxu0 %v2588
    %2882 = vmatprep.subr.bf16.mxu0 %v2585
    %2883 = vmatpush2.bf16.msra.mxu0 %v2584
    %2884 = vmatprep.subr.bf16.mxu0 %v2581
    %2885 = vmatpush2.bf16.msra.mxu0 %v2580
    %2886 = vmatprep.subr.bf16.mxu0 %v2577
    %2887 = vmatpush2.bf16.msra.mxu0 %v2576
    %2888 = vmatprep.subr.bf16.mxu0 %v2573
    %2889 = vmatpush2.bf16.msra.mxu0 %v2572
    %2890 = vmatprep.subr.bf16.mxu0 %v2569
    %2891 = vmatpush2.bf16.msra.mxu0 %v2568
    %2892 = vmatprep.subr.bf16.mxu0 %v2565
    %2893 = vmatpush2.bf16.msra.mxu0 %v2564
    %2894 = vmatprep.subr.bf16.mxu0 %v2561
    %2895 = vmatpush2.bf16.msra.mxu0 %v2560
    %2896 = vmatprep.mubr.bf16.mxu0 %v1989
    %2897 = vmatmul.mubr.bf16.gmra.mxu0 %v1988
    %v2898 = vpop.f32.mrf.mxu0
    %v2899 = vadd.f32 %v2133, %v2898
    %v2900 = vpop.f32.mrf.mxu0
    %v2901 = vadd.f32 %v2137, %v2900
    %v2902 = vpop.f32.mrf.mxu0
    %v2903 = vpop.f32.mrf.mxu0
    %2904 = vdwg.mxu0
    %2905 = vmatprep.subr.bf16.mxu0 %v2621
    %2906 = vmatpush1.bf16.msra.mxu0 %v2620
    %2907 = vmatprep.subr.bf16.mxu0 %v2617
    %2908 = vmatpush1.bf16.msra.mxu0 %v2616
    %2909 = vmatprep.subr.bf16.mxu0 %v2613
    %2910 = vmatpush1.bf16.msra.mxu0 %v2612
    %2911 = vmatprep.subr.bf16.mxu0 %v2609
    %2912 = vmatpush1.bf16.msra.mxu0 %v2608
    %2913 = vmatprep.subr.bf16.mxu0 %v2605
    %2914 = vmatpush1.bf16.msra.mxu0 %v2604
    %2915 = vmatprep.subr.bf16.mxu0 %v2601
    %2916 = vmatpush1.bf16.msra.mxu0 %v2600
    %2917 = vmatprep.subr.bf16.mxu0 %v2597
    %2918 = vmatpush1.bf16.msra.mxu0 %v2596
    %2919 = vmatprep.subr.bf16.mxu0 %v2593
    %2920 = vmatpush1.bf16.msra.mxu0 %v2592
    %2921 = vmatprep.subr.bf16.mxu0 %v2653
    %2922 = vmatpush2.bf16.msra.mxu0 %v2652
    %2923 = vmatprep.subr.bf16.mxu0 %v2649
    %2924 = vmatpush2.bf16.msra.mxu0 %v2648
    %2925 = vmatprep.subr.bf16.mxu0 %v2645
    %2926 = vmatpush2.bf16.msra.mxu0 %v2644
    %2927 = vmatprep.subr.bf16.mxu0 %v2641
    %2928 = vmatpush2.bf16.msra.mxu0 %v2640
    %2929 = vmatprep.subr.bf16.mxu0 %v2637
    %2930 = vmatpush2.bf16.msra.mxu0 %v2636
    %2931 = vmatprep.subr.bf16.mxu0 %v2633
    %2932 = vmatpush2.bf16.msra.mxu0 %v2632
    %2933 = vmatprep.subr.bf16.mxu0 %v2629
    %2934 = vmatpush2.bf16.msra.mxu0 %v2628
    %2935 = vmatprep.subr.bf16.mxu0 %v2625
    %2936 = vmatpush2.bf16.msra.mxu0 %v2624
    %2937 = vmatprep.mubr.bf16.mxu0 %v1991
    %2938 = vmatmul.mubr.bf16.gmra.mxu0 %v1990
    %v2939 = vpop.f32.mrf.mxu0
    %v2940 = vadd.f32 %v2899, %v2939
    %v2941 = vpop.f32.mrf.mxu0
    %v2942 = vadd.f32 %v2901, %v2941
    %v2943 = vpop.f32.mrf.mxu0
    %v2944 = vpop.f32.mrf.mxu0
    %2945 = vdwg.mxu0
    %s2946 = sld [smem:[#allocation2]]
    %v2947 = vlaneseq
    %v2948 = vshrl.u32 %v2947, 7
    %v2949 = vstv %s2946
    %vm2950 = vcmp.lt.s32.totalorder %v2948, %v2949
    %s2951 = scvt.s32.f32 %s2946
    %v2952 = vstv %s2951
    %v2953 = vrcp.pop %v2952
    %s2954 = vtos %v2953
    %v2955 = vsel %vm2950, 1, 0
    %vm2956 = vcmp.eq.s32.totalorder %v2955, 1
    %v2957 = vsel %vm2956, %v2858, 0.0
    %v2958 = vsel %vm2956, %v2860, 0.0
    %v2959 = vsel %vm2956, %v2940, 0.0
    %v2960 = vsel %vm2956, %v2942, 0.0
    %v2961 = vrot.slane %v2957, 4
    %v2962 = vadd.f32 %v2957, %v2961
    %v2963 = vrot.slane %v2962, 2
    %v2964 = vadd.f32 %v2962, %v2963
    %v2965 = vrot.slane %v2964, 1
    %v2966 = vadd.f32 %v2964, %v2965
    %v2967 = vrot.slane %v2958, 4
    %v2968 = vadd.f32 %v2958, %v2967
    %v2969 = vrot.slane %v2968, 2
    %v2970 = vadd.f32 %v2968, %v2969
    %v2971 = vrot.slane %v2970, 1
    %v2972 = vadd.f32 %v2970, %v2971
    %v2973 = vrot.slane %v2959, 4
    %v2974 = vadd.f32 %v2959, %v2973
    %v2975 = vrot.slane %v2974, 2
    %v2976 = vadd.f32 %v2974, %v2975
    %v2977 = vrot.slane %v2976, 1
    %v2978 = vadd.f32 %v2976, %v2977
    %v2979 = vrot.slane %v2960, 4
    %v2980 = vadd.f32 %v2960, %v2979
    %v2981 = vrot.slane %v2980, 2
    %v2982 = vadd.f32 %v2980, %v2981
    %v2983 = vrot.slane %v2982, 1
    %v2984 = vadd.f32 %v2982, %v2983
    %v2985 = vstv %s2954
    %v2986 = vmul.f32 %v2966, %v2985
    %v2987 = vmul.f32 %v2972, %v2985
    %v2988 = vmul.f32 %v2978, %v2985
    %v2989 = vmul.f32 %v2984, %v2985
    %v2990 = vsub.f32 %v2858, %v2986
    %v2991 = vsub.f32 %v2860, %v2987
    %v2992 = vsub.f32 %v2940, %v2988
    %v2993 = vsub.f32 %v2942, %v2989
    %v2994 = vsel %vm2956, %v2990, 0.0
    %v2995 = vsel %vm2956, %v2991, 0.0
    %v2996 = vsel %vm2956, %v2992, 0.0
    %v2997 = vsel %vm2956, %v2993, 0.0
    %v2998 = vmul.f32 %v2994, %v2994
    %v2999 = vmul.f32 %v2995, %v2995
    %v3000 = vmul.f32 %v2996, %v2996
    %v3001 = vmul.f32 %v2997, %v2997
    %v3002 = vrot.slane %v2998, 4
    %v3003 = vadd.f32 %v2998, %v3002
    %v3004 = vrot.slane %v3003, 2
    %v3005 = vadd.f32 %v3003, %v3004
    %v3006 = vrot.slane %v3005, 1
    %v3007 = vadd.f32 %v3005, %v3006
    %v3008 = vrot.slane %v2999, 4
    %v3009 = vadd.f32 %v2999, %v3008
    %v3010 = vrot.slane %v3009, 2
    %v3011 = vadd.f32 %v3009, %v3010
    %v3012 = vrot.slane %v3011, 1
    %v3013 = vadd.f32 %v3011, %v3012
    %v3014 = vrot.slane %v3000, 4
    %v3015 = vadd.f32 %v3000, %v3014
    %v3016 = vrot.slane %v3015, 2
    %v3017 = vadd.f32 %v3015, %v3016
    %v3018 = vrot.slane %v3017, 1
    %v3019 = vadd.f32 %v3017, %v3018
    %v3020 = vrot.slane %v3001, 4
    %v3021 = vadd.f32 %v3001, %v3020
    %v3022 = vrot.slane %v3021, 2
    %v3023 = vadd.f32 %v3021, %v3022
    %v3024 = vrot.slane %v3023, 1
    %v3025 = vadd.f32 %v3023, %v3024
    %v3026 = vmul.f32 %v3007, %v2985
    %v3027 = vmul.f32 %v3013, %v2985
    %v3028 = vmul.f32 %v3019, %v2985
    %v3029 = vmul.f32 %v3025, %v2985
    %v3030 = vadd.f32 %v3026, 1e-05
    %v3031 = vadd.f32 %v3027, 1e-05
    %v3032 = vadd.f32 %v3028, 1e-05
    %v3033 = vadd.f32 %v3029, 1e-05
    %v3034 = vrsqrt.pop %v3030
    %v3035 = vrsqrt.pop %v3031
    %v3036 = vrsqrt.pop %v3032
    %v3037 = vrsqrt.pop %v3033
    %v3038 = vmul.f32 %v2990, %v3034
    %v3039 = vmul.f32 %v2991, %v3035
    %v3040 = vmul.f32 %v2992, %v3036
    %v3041 = vmul.f32 %v2993, %v3037
    %v3042 = vld [vmem:[%s6] sm:$0xf]
    %v3044 = vlaneseq
    %v3045 = vshrl.u32 %v3044, 7
    %v3046 = vsub.s32 0, %v3045
    %v3047 = vrot.slane %v3042, %v3046
    %v3048 = vlaneseq
    %v3049 = vshrl.u32 %v3048, 7
    %v3050 = vsub.s32 1, %v3049
    %v3051 = vrot.slane %v3042, %v3050
    %v3052 = vlaneseq
    %v3053 = vshrl.u32 %v3052, 7
    %v3054 = vsub.s32 2, %v3053
    %v3055 = vrot.slane %v3042, %v3054
    %v3056 = vlaneseq
    %v3057 = vshrl.u32 %v3056, 7
    %v3058 = vsub.s32 3, %v3057
    %v3059 = vrot.slane %v3042, %v3058
    %v3064 = vmul.f32 %v3038, %v3047
    %v3065 = vmul.f32 %v3039, %v3051
    %v3066 = vmul.f32 %v3040, %v3055
    %v3067 = vmul.f32 %v3041, %v3059
    %v3068 = vld [vmem:[%s7] sm:$0xf]
    %v3070 = vlaneseq
    %v3071 = vshrl.u32 %v3070, 7
    %v3072 = vsub.s32 0, %v3071
    %v3073 = vrot.slane %v3068, %v3072
    %v3074 = vlaneseq
    %v3075 = vshrl.u32 %v3074, 7
    %v3076 = vsub.s32 1, %v3075
    %v3077 = vrot.slane %v3068, %v3076
    %v3078 = vlaneseq
    %v3079 = vshrl.u32 %v3078, 7
    %v3080 = vsub.s32 2, %v3079
    %v3081 = vrot.slane %v3068, %v3080
    %v3082 = vlaneseq
    %v3083 = vshrl.u32 %v3082, 7
    %v3084 = vsub.s32 3, %v3083
    %v3085 = vrot.slane %v3068, %v3084
    %v3090 = vadd.f32 %v3064, %v3073
    %v3091 = vadd.f32 %v3065, %v3077
    %v3092 = vadd.f32 %v3066, %v3081
    %v3093 = vadd.f32 %v3067, %v3085
    %v3094 = vmul.f32 %v3090, 0.01
    %v3095 = vmul.f32 %v3091, 0.01
    %v3096 = vmul.f32 %v3092, 0.01
    %v3097 = vmul.f32 %v3093, 0.01
    %v3098 = vmax.f32 %v3090, %v3094
    %v3099 = vmax.f32 %v3091, %v3095
    %v3100 = vmax.f32 %v3092, %v3096
    %v3101 = vmax.f32 %v3093, %v3097
    %v3102 = vpack.c.bf16 %v3098, %v3098
    %v3103 = vpack.c.bf16 %v3099, %v3099
    %v3104 = vpack.c.bf16 %v3100, %v3100
    %v3105 = vpack.c.bf16 %v3101, %v3101
    %v3106 = vld [vmem:[#allocation7] sm:$0xf]
    %v3107 = vld [vmem:[#allocation7 + $0x4] sm:$0xf]
    %v3108 = vld [vmem:[#allocation7 + $0x8] sm:$0xf]
    %v3109 = vld [vmem:[#allocation7 + $0xc] sm:$0xf]
    %v3110 = vld [vmem:[#allocation7 + $0x10] sm:$0xf]
    %v3111 = vld [vmem:[#allocation7 + $0x14] sm:$0xf]
    %v3112 = vld [vmem:[#allocation7 + $0x18] sm:$0xf]
    %v3113 = vld [vmem:[#allocation7 + $0x1c] sm:$0xf]
    %v3114 = vld [vmem:[#allocation7 + $0x20] sm:$0xf]
    %v3115 = vld [vmem:[#allocation7 + $0x24] sm:$0xf]
    %v3116 = vld [vmem:[#allocation7 + $0x28] sm:$0xf]
    %v3117 = vld [vmem:[#allocation7 + $0x2c] sm:$0xf]
    %v3118 = vld [vmem:[#allocation7 + $0x30] sm:$0xf]
    %v3119 = vld [vmem:[#allocation7 + $0x34] sm:$0xf]
    %v3120 = vld [vmem:[#allocation7 + $0x38] sm:$0xf]
    %v3121 = vld [vmem:[#allocation7 + $0x3c] sm:$0xf]
    %v3122 = vld [vmem:[#allocation7 + $0x40] sm:$0xf]
    %v3123 = vld [vmem:[#allocation7 + $0x44] sm:$0xf]
    %v3124 = vld [vmem:[#allocation7 + $0x48] sm:$0xf]
    %v3125 = vld [vmem:[#allocation7 + $0x4c] sm:$0xf]
    %v3126 = vld [vmem:[#allocation7 + $0x50] sm:$0xf]
    %v3127 = vld [vmem:[#allocation7 + $0x54] sm:$0xf]
    %v3128 = vld [vmem:[#allocation7 + $0x58] sm:$0xf]
    %v3129 = vld [vmem:[#allocation7 + $0x5c] sm:$0xf]
    %v3130 = vld [vmem:[#allocation7 + $0x60] sm:$0xf]
    %v3131 = vld [vmem:[#allocation7 + $0x64] sm:$0xf]
    %v3132 = vld [vmem:[#allocation7 + $0x68] sm:$0xf]
    %v3133 = vld [vmem:[#allocation7 + $0x6c] sm:$0xf]
    %v3134 = vld [vmem:[#allocation7 + $0x70] sm:$0xf]
    %v3135 = vld [vmem:[#allocation7 + $0x74] sm:$0xf]
    %v3136 = vld [vmem:[#allocation7 + $0x78] sm:$0xf]
    %v3137 = vld [vmem:[#allocation7 + $0x7c] sm:$0xf]
    %v3138 = vld [vmem:[#allocation7 + $0x80] sm:$0xf]
    %v3139 = vld [vmem:[#allocation7 + $0x84] sm:$0xf]
    %v3140 = vld [vmem:[#allocation7 + $0x88] sm:$0xf]
    %v3141 = vld [vmem:[#allocation7 + $0x8c] sm:$0xf]
    %v3142 = vld [vmem:[#allocation7 + $0x90] sm:$0xf]
    %v3143 = vld [vmem:[#allocation7 + $0x94] sm:$0xf]
    %v3144 = vld [vmem:[#allocation7 + $0x98] sm:$0xf]
    %v3145 = vld [vmem:[#allocation7 + $0x9c] sm:$0xf]
    %v3146 = vld [vmem:[#allocation7 + $0xa0] sm:$0xf]
    %v3147 = vld [vmem:[#allocation7 + $0xa4] sm:$0xf]
    %v3148 = vld [vmem:[#allocation7 + $0xa8] sm:$0xf]
    %v3149 = vld [vmem:[#allocation7 + $0xac] sm:$0xf]
    %v3150 = vld [vmem:[#allocation7 + $0xb0] sm:$0xf]
    %v3151 = vld [vmem:[#allocation7 + $0xb4] sm:$0xf]
    %v3152 = vld [vmem:[#allocation7 + $0xb8] sm:$0xf]
    %v3153 = vld [vmem:[#allocation7 + $0xbc] sm:$0xf]
    %v3154 = vld [vmem:[#allocation7 + $0xc0] sm:$0xf]
    %v3155 = vld [vmem:[#allocation7 + $0xc4] sm:$0xf]
    %v3156 = vld [vmem:[#allocation7 + $0xc8] sm:$0xf]
    %v3157 = vld [vmem:[#allocation7 + $0xcc] sm:$0xf]
    %v3158 = vld [vmem:[#allocation7 + $0xd0] sm:$0xf]
    %v3159 = vld [vmem:[#allocation7 + $0xd4] sm:$0xf]
    %v3160 = vld [vmem:[#allocation7 + $0xd8] sm:$0xf]
    %v3161 = vld [vmem:[#allocation7 + $0xdc] sm:$0xf]
    %v3162 = vld [vmem:[#allocation7 + $0xe0] sm:$0xf]
    %v3163 = vld [vmem:[#allocation7 + $0xe4] sm:$0xf]
    %v3164 = vld [vmem:[#allocation7 + $0xe8] sm:$0xf]
    %v3165 = vld [vmem:[#allocation7 + $0xec] sm:$0xf]
    %v3166 = vld [vmem:[#allocation7 + $0xf0] sm:$0xf]
    %v3167 = vld [vmem:[#allocation7 + $0xf4] sm:$0xf]
    %v3168 = vld [vmem:[#allocation7 + $0xf8] sm:$0xf]
    %v3169 = vld [vmem:[#allocation7 + $0xfc] sm:$0xf]
    %v3170 = vld [vmem:[%s9] sm:$0x1]
    %v3172 = vlaneseq
    %v3173 = vshrl.u32 %v3172, 7
    %v3174 = vsub.s32 0, %v3173
    %v3175 = vrot.slane %v3170, %v3174
    %v3241 = vunpack.c.l.b16 %v3106
    %v3242 = vunpack.c.l.b16 %v3107
    %v3243 = vunpack.c.l.b16 %v3108
    %v3244 = vunpack.c.l.b16 %v3109
    %v3245 = vunpack.c.l.b16 %v3110
    %v3246 = vunpack.c.l.b16 %v3111
    %v3247 = vunpack.c.l.b16 %v3112
    %v3248 = vunpack.c.l.b16 %v3113
    %v3249 = vunpack.c.l.b16 %v3114
    %v3250 = vunpack.c.l.b16 %v3115
    %v3251 = vunpack.c.l.b16 %v3116
    %v3252 = vunpack.c.l.b16 %v3117
    %v3253 = vunpack.c.l.b16 %v3118
    %v3254 = vunpack.c.l.b16 %v3119
    %v3255 = vunpack.c.l.b16 %v3120
    %v3256 = vunpack.c.l.b16 %v3121
    %v3257 = vunpack.c.l.b16 %v3122
    %v3258 = vunpack.c.l.b16 %v3123
    %v3259 = vunpack.c.l.b16 %v3124
    %v3260 = vunpack.c.l.b16 %v3125
    %v3261 = vunpack.c.l.b16 %v3126
    %v3262 = vunpack.c.l.b16 %v3127
    %v3263 = vunpack.c.l.b16 %v3128
    %v3264 = vunpack.c.l.b16 %v3129
    %v3265 = vunpack.c.l.b16 %v3130
    %v3266 = vunpack.c.l.b16 %v3131
    %v3267 = vunpack.c.l.b16 %v3132
    %v3268 = vunpack.c.l.b16 %v3133
    %v3269 = vunpack.c.l.b16 %v3134
    %v3270 = vunpack.c.l.b16 %v3135
    %v3271 = vunpack.c.l.b16 %v3136
    %v3272 = vunpack.c.l.b16 %v3137
    %v3273 = vunpack.c.l.b16 %v3138
    %v3274 = vunpack.c.l.b16 %v3139
    %v3275 = vunpack.c.l.b16 %v3140
    %v3276 = vunpack.c.l.b16 %v3141
    %v3277 = vunpack.c.l.b16 %v3142
    %v3278 = vunpack.c.l.b16 %v3143
    %v3279 = vunpack.c.l.b16 %v3144
    %v3280 = vunpack.c.l.b16 %v3145
    %v3281 = vunpack.c.l.b16 %v3146
    %v3282 = vunpack.c.l.b16 %v3147
    %v3283 = vunpack.c.l.b16 %v3148
    %v3284 = vunpack.c.l.b16 %v3149
    %v3285 = vunpack.c.l.b16 %v3150
    %v3286 = vunpack.c.l.b16 %v3151
    %v3287 = vunpack.c.l.b16 %v3152
    %v3288 = vunpack.c.l.b16 %v3153
    %v3289 = vunpack.c.l.b16 %v3154
    %v3290 = vunpack.c.l.b16 %v3155
    %v3291 = vunpack.c.l.b16 %v3156
    %v3292 = vunpack.c.l.b16 %v3157
    %v3293 = vunpack.c.l.b16 %v3158
    %v3294 = vunpack.c.l.b16 %v3159
    %v3295 = vunpack.c.l.b16 %v3160
    %v3296 = vunpack.c.l.b16 %v3161
    %v3297 = vunpack.c.l.b16 %v3162
    %v3298 = vunpack.c.l.b16 %v3163
    %v3299 = vunpack.c.l.b16 %v3164
    %v3300 = vunpack.c.l.b16 %v3165
    %v3301 = vunpack.c.l.b16 %v3166
    %v3302 = vunpack.c.l.b16 %v3167
    %v3303 = vunpack.c.l.b16 %v3168
    %v3304 = vunpack.c.l.b16 %v3169
    %v3305 = vpack.c.b16 %v3242, %v3241
    %v3306 = vpack.c.b16 %v3244, %v3243
    %v3307 = vpack.c.b16 %v3246, %v3245
    %v3308 = vpack.c.b16 %v3248, %v3247
    %v3309 = vpack.c.b16 %v3250, %v3249
    %v3310 = vpack.c.b16 %v3252, %v3251
    %v3311 = vpack.c.b16 %v3254, %v3253
    %v3312 = vpack.c.b16 %v3256, %v3255
    %v3313 = vpack.c.b16 %v3258, %v3257
    %v3314 = vpack.c.b16 %v3260, %v3259
    %v3315 = vpack.c.b16 %v3262, %v3261
    %v3316 = vpack.c.b16 %v3264, %v3263
    %v3317 = vpack.c.b16 %v3266, %v3265
    %v3318 = vpack.c.b16 %v3268, %v3267
    %v3319 = vpack.c.b16 %v3270, %v3269
    %v3320 = vpack.c.b16 %v3272, %v3271
    %v3321 = vpack.c.b16 %v3274, %v3273
    %v3322 = vpack.c.b16 %v3276, %v3275
    %v3323 = vpack.c.b16 %v3278, %v3277
    %v3324 = vpack.c.b16 %v3280, %v3279
    %v3325 = vpack.c.b16 %v3282, %v3281
    %v3326 = vpack.c.b16 %v3284, %v3283
    %v3327 = vpack.c.b16 %v3286, %v3285
    %v3328 = vpack.c.b16 %v3288, %v3287
    %v3329 = vpack.c.b16 %v3290, %v3289
    %v3330 = vpack.c.b16 %v3292, %v3291
    %v3331 = vpack.c.b16 %v3294, %v3293
    %v3332 = vpack.c.b16 %v3296, %v3295
    %v3333 = vpack.c.b16 %v3298, %v3297
    %v3334 = vpack.c.b16 %v3300, %v3299
    %v3335 = vpack.c.b16 %v3302, %v3301
    %v3336 = vpack.c.b16 %v3304, %v3303
    %3369 = vmatprep.subr.bf16.mxu0 0
    %3370 = vmatpush1.bf16.msra.mxu0 %v3312
    %3371 = vmatprep.subr.bf16.mxu0 0
    %3372 = vmatpush1.bf16.msra.mxu0 %v3311
    %3373 = vmatprep.subr.bf16.mxu0 0
    %3374 = vmatpush1.bf16.msra.mxu0 %v3310
    %3375 = vmatprep.subr.bf16.mxu0 0
    %3376 = vmatpush1.bf16.msra.mxu0 %v3309
    %3377 = vmatprep.subr.bf16.mxu0 0
    %3378 = vmatpush1.bf16.msra.mxu0 %v3308
    %3379 = vmatprep.subr.bf16.mxu0 0
    %3380 = vmatpush1.bf16.msra.mxu0 %v3307
    %3381 = vmatprep.subr.bf16.mxu0 0
    %3382 = vmatpush1.bf16.msra.mxu0 %v3306
    %3383 = vmatprep.subr.bf16.mxu0 0
    %3384 = vmatpush1.bf16.msra.mxu0 %v3305
    %3385 = vmatprep.subr.bf16.mxu0 0
    %3386 = vmatpush2.bf16.msra.mxu0 %v3320
    %3387 = vmatprep.subr.bf16.mxu0 0
    %3388 = vmatpush2.bf16.msra.mxu0 %v3319
    %3389 = vmatprep.subr.bf16.mxu0 0
    %3390 = vmatpush2.bf16.msra.mxu0 %v3318
    %3391 = vmatprep.subr.bf16.mxu0 0
    %3392 = vmatpush2.bf16.msra.mxu0 %v3317
    %3393 = vmatprep.subr.bf16.mxu0 0
    %3394 = vmatpush2.bf16.msra.mxu0 %v3316
    %3395 = vmatprep.subr.bf16.mxu0 0
    %3396 = vmatpush2.bf16.msra.mxu0 %v3315
    %3397 = vmatprep.subr.bf16.mxu0 0
    %3398 = vmatpush2.bf16.msra.mxu0 %v3314
    %3399 = vmatprep.subr.bf16.mxu0 0
    %3400 = vmatpush2.bf16.msra.mxu0 %v3313
    %3401 = vmatprep.mubr.bf16.mxu0 %v3103
    %3402 = vmatmul.mubr.bf16.gmra.mxu0 %v3102
    %v3403 = vpop.f32.mrf.mxu0
    %v3404 = vadd.f32 %v3175, %v3403
    %v3405 = vpop.f32.mrf.mxu0
    %v3406 = vpop.f32.mrf.mxu0
    %v3407 = vpop.f32.mrf.mxu0
    %3408 = vdwg.mxu0
    %3409 = vmatprep.subr.bf16.mxu0 0
    %3410 = vmatpush1.bf16.msra.mxu0 %v3328
    %3411 = vmatprep.subr.bf16.mxu0 0
    %3412 = vmatpush1.bf16.msra.mxu0 %v3327
    %3413 = vmatprep.subr.bf16.mxu0 0
    %3414 = vmatpush1.bf16.msra.mxu0 %v3326
    %3415 = vmatprep.subr.bf16.mxu0 0
    %3416 = vmatpush1.bf16.msra.mxu0 %v3325
    %3417 = vmatprep.subr.bf16.mxu0 0
    %3418 = vmatpush1.bf16.msra.mxu0 %v3324
    %3419 = vmatprep.subr.bf16.mxu0 0
    %3420 = vmatpush1.bf16.msra.mxu0 %v3323
    %3421 = vmatprep.subr.bf16.mxu0 0
    %3422 = vmatpush1.bf16.msra.mxu0 %v3322
    %3423 = vmatprep.subr.bf16.mxu0 0
    %3424 = vmatpush1.bf16.msra.mxu0 %v3321
    %3425 = vmatprep.subr.bf16.mxu0 0
    %3426 = vmatpush2.bf16.msra.mxu0 %v3336
    %3427 = vmatprep.subr.bf16.mxu0 0
    %3428 = vmatpush2.bf16.msra.mxu0 %v3335
    %3429 = vmatprep.subr.bf16.mxu0 0
    %3430 = vmatpush2.bf16.msra.mxu0 %v3334
    %3431 = vmatprep.subr.bf16.mxu0 0
    %3432 = vmatpush2.bf16.msra.mxu0 %v3333
    %3433 = vmatprep.subr.bf16.mxu0 0
    %3434 = vmatpush2.bf16.msra.mxu0 %v3332
    %3435 = vmatprep.subr.bf16.mxu0 0
    %3436 = vmatpush2.bf16.msra.mxu0 %v3331
    %3437 = vmatprep.subr.bf16.mxu0 0
    %3438 = vmatpush2.bf16.msra.mxu0 %v3330
    %3439 = vmatprep.subr.bf16.mxu0 0
    %3440 = vmatpush2.bf16.msra.mxu0 %v3329
    %3441 = vmatprep.mubr.bf16.mxu0 %v3105
    %3442 = vmatmul.mubr.bf16.gmra.mxu0 %v3104
    %v3443 = vpop.f32.mrf.mxu0
    %v3444 = vadd.f32 %v3404, %v3443
    %v3445 = vpop.f32.mrf.mxu0
    %v3446 = vpop.f32.mrf.mxu0
    %v3447 = vpop.f32.mrf.mxu0
    %3448 = vdwg.mxu0
    %3449 = vst [vmem:[%s10] sm:$0xff] %v3444
    // Predicated region
    $region54: #{encoder_forward.1} parent=1 // pred_check
      _
    $region55: #{encoder_forward.1} parent=1 // pred_check_branch
      %3451 = sbr.rel (0) target = $region57
    $region56: #{encoder_forward.1} parent=1 // pred_region
      _
    $region57: #{encoder_forward.1} parent=1 // pred_fallthru
      _
    // Predicated region
    $region58: #{encoder_forward.1} parent=1 // pred_check
      _
    $region59: #{encoder_forward.1} parent=1 // pred_check_branch
      %3453 = sbr.rel (0) target = $region61
    $region60: #{encoder_forward.1} parent=1 // pred_region
      _
    $region61: #{encoder_forward.1} parent=1 // pred_fallthru
      _
    %3454 = vsyncpa [#allocation4], 1
    %3455 = vsyncpa [#allocation6], 1

</llo_original>
